<compile_context>
chip_gen: v7x
topology: tpu7x:2x2x1
jax: 0.10.0
libtpu: 0.0.40
codegen_flags: <defaults>
</compile_context>

<pallas_src>
import math

import jax
import jax.numpy as jnp
import numpy as np
from jax.experimental import pallas as pl
from jax.experimental.pallas import tpu as pltpu


# ----------------------------- Pallas kernel --------------------------------

def _fused_lstm_fc_kernel(x_ref, *refs):
    """Fused stacked-LSTM + FC forward.

    Argument layout (after x_ref, time-major flattened input (T*B, D)):
      inputs : [w_ih_0, w_hh_0, b_0, ..., w_ih_{L-1}, w_hh_{L-1}, b_{L-1},
                w_fc_row, b_fc]
      outputs: [out_ref]
      scratch: [xp_scr]

      w_ih_l   : (D_in, 4H)   fused input weights, gate blocks [i, f, g, o]
      w_hh_l   : (H, 4H)      fused recurrent weights
      b_l      : (1, 4H)      fused bias (b_ih + b_hh)
      w_fc_row : (1, H)       final Linear weight (row vector)
      b_fc     : (1, 1)       final Linear bias
      out_ref  : (B, 1)
      xp_scr   : VMEM (T*B, 4H)  hoisted, lane-dense input projections
    """
    num_layers = (len(refs) - 4) // 3
    layer_refs = refs[: 3 * num_layers]
    w_fc_ref, b_fc_ref, out_ref, xp_scr = refs[3 * num_layers:]

    TB, H4 = xp_scr.shape
    B = out_ref.shape[0]
    T = TB // B
    H = H4 // 4

    # Lane mask selecting the g-gate block (tanh) vs i/f/o (sigmoid).
    # Hoisted out of every loop (broadcast_in_dim is not CSE'd).
    lane = jax.lax.broadcasted_iota(jnp.int32, (B, H4), 1)
    is_g = (lane >= 2 * H) & (lane < 3 * H)

    x_flat = x_ref[...]                      # (T*B, D_in) time-major flattened
    h = None
    for layer in range(num_layers):
        wi_ref = layer_refs[3 * layer + 0]   # (D_in, 4H)
        wh_ref = layer_refs[3 * layer + 1]   # (H, 4H)
        b_ref = layer_refs[3 * layer + 2]    # (1, 4H)

        # ---- Hoisted input projection: one lane-dense MXU op + one store ----
        # xp[t*B + b, :] = x[t, b, :] @ W_ih + (b_ih + b_hh)
        xp_scr[...] = (
            jnp.dot(x_flat, wi_ref[...], preferred_element_type=jnp.float32)
            + b_ref[...])

        # Only the fused recurrent weight (4 vregs at H=32) stays live across
        # the unrolled recurrence; bias is already folded into xp_scr.
        wh = wh_ref[...]                     # (H, 4H)

        # --------------------------- Recurrence -----------------------------
        h = jnp.zeros((B, H), jnp.float32)
        c = jnp.zeros((B, H), jnp.float32)
        hs = []
        for t in range(T):
            # One MXU matmul per step, lane-dense (B, 4H) result.
            pre = (xp_scr[pl.ds(t * B, B), :]
                   + jnp.dot(h, wh, preferred_element_type=jnp.float32))
            # Full-slab activations (1 sigmoid + 1 tanh push), VPU select.
            act = jnp.where(is_g, jnp.tanh(pre), jax.nn.sigmoid(pre))
            i_g = act[:, 0 * H:1 * H]
            f_g = act[:, 1 * H:2 * H]
            g_g = act[:, 2 * H:3 * H]
            o_g = act[:, 3 * H:4 * H]
            c = f_g * c + i_g * g_g
            h = o_g * jnp.tanh(c)
            if layer + 1 < num_layers:
                hs.append(h)                 # no store on the serial path

        if layer + 1 < num_layers:
            # One-shot handoff to the next layer's batched projection.
            x_flat = jnp.concatenate(hs, axis=0)      # (T*B, H), time-major

    # ---- Final Linear(H, 1) on the last hidden state (VPU mul + reduce) ----
    out_ref[...] = (jnp.sum(h * w_fc_ref[...], axis=1, keepdims=True)
                    + b_fc_ref[...])


# ------------------------------ JAX wrapper ----------------------------------

@jax.jit
def lstm_forward(params, x_btd):
    """Equivalent of LSTM.forward: x (B, T, D) -> (B, 1)."""
    x = jnp.transpose(x_btd, (1, 0, 2)).astype(jnp.float32)   # (T, B, D)
    T, B, D = x.shape
    x_flat = x.reshape(T * B, D)                              # time-major flat
    layers = params["layers"]
    H = layers[0]["w_hh"].shape[0]

    flat = []
    for lp in layers:
        flat += [lp["w_ih"], lp["w_hh"], lp["b"]]
    flat += [params["w_fc_row"], params["b_fc"]]

    return pl.pallas_call(
        _fused_lstm_fc_kernel,
        out_shape=jax.ShapeDtypeStruct((B, 1), jnp.float32),
        scratch_shapes=[
            pltpu.VMEM((T * B, 4 * H), jnp.float32),   # lane-dense projections
        ],
    )(x_flat, *flat)


def init_params(key, input_size, hidden_size, num_layers):
    """Deterministic parameter init matching nn.LSTM / nn.Linear shapes,
    stored in the fused-gate layout consumed by the kernel."""
    params = {"layers": []}
    H = hidden_size
    k = 1.0 / math.sqrt(hidden_size)
    keys = jax.random.split(key, 4 * num_layers + 2)
    ki = 0
    for layer in range(num_layers):
        d_in = input_size if layer == 0 else hidden_size
        w_ih = jax.random.uniform(keys[ki], (4 * H, d_in), jnp.float32, -k, k); ki += 1
        w_hh = jax.random.uniform(keys[ki], (4 * H, H), jnp.float32, -k, k); ki += 1
        b_ih = jax.random.uniform(keys[ki], (4 * H,), jnp.float32, -k, k); ki += 1
        b_hh = jax.random.uniform(keys[ki], (4 * H,), jnp.float32, -k, k); ki += 1
        params["layers"].append({
            # PyTorch gate order [i, f, g, o] preserved along the 4H column axis.
            "w_ih": jnp.transpose(w_ih),                # (d_in, 4H)
            "w_hh": jnp.transpose(w_hh),                # (H, 4H)
            "b": (b_ih + b_hh).reshape(1, 4 * H),       # (1, 4H)
        })
    w_fc = jax.random.uniform(keys[ki], (1, H), jnp.float32, -k, k); ki += 1
    b_fc = jax.random.uniform(keys[ki], (1,), jnp.float32, -k, k)
    params["w_fc_row"] = w_fc                 # (1, H)
    params["b_fc"] = b_fc.reshape(1, 1)       # (1, 1)
    return params


# ------------------------------ pure-JAX ref ---------------------------------

def lstm_forward_ref(params, x_btd):
    x = jnp.transpose(x_btd, (1, 0, 2)).astype(jnp.float32)   # (T, B, D)
    for lp in params["layers"]:
        wi, wh, b = lp["w_ih"], lp["w_hh"], lp["b"]
        H = wh.shape[0]
        B = x.shape[1]

        def step(carry, x_t, wi=wi, wh=wh, b=b, H=H):
            h, c = carry
            z = x_t @ wi + h @ wh + b                       # (B, 4H)
            i = jax.nn.sigmoid(z[:, 0 * H:1 * H])
            f = jax.nn.sigmoid(z[:, 1 * H:2 * H])
            g = jnp.tanh(z[:, 2 * H:3 * H])
            o = jax.nn.sigmoid(z[:, 3 * H:4 * H])
            c = f * c + i * g
            h = o * jnp.tanh(c)
            return (h, c), h

        init = (jnp.zeros((B, H), jnp.float32), jnp.zeros((B, H), jnp.float32))
        _, x = jax.lax.scan(step, init, x)
    return x[-1] @ params["w_fc_row"].T + params["b_fc"]


# ----------------------------------- main ------------------------------------

if __name__ == "__main__":
    INPUT_SIZE = 4
    HIDDEN_SIZE = 32
    NUM_LAYERS = 2
    BATCH = 2
    SEQ = 8

    key = jax.random.PRNGKey(0)
    k_param, k_x = jax.random.split(key)
    params = init_params(k_param, INPUT_SIZE, HIDDEN_SIZE, NUM_LAYERS)
    x = jax.random.normal(k_x, (BATCH, SEQ, INPUT_SIZE), dtype=jnp.float32)

    out = jax.block_until_ready(lstm_forward(params, x))
    assert out.shape == (BATCH, 1), out.shape

    ref = jax.block_until_ready(lstm_forward_ref(params, x))
    np.testing.assert_allclose(np.asarray(out), np.asarray(ref),
                               rtol=1e-5, atol=1e-5)

    print("KERNEL_OK")
</pallas_src>

<mosaic_0001>
module attributes {stable_mosaic.version = 11 : i64} {
  func.func @_fused_lstm_fc_kernel(%arg0: memref<16x4xf32, #tpu.memory_space<vmem>>, %arg1: memref<4x128xf32, #tpu.memory_space<vmem>>, %arg2: memref<32x128xf32, #tpu.memory_space<vmem>>, %arg3: memref<1x128xf32, #tpu.memory_space<vmem>>, %arg4: memref<32x128xf32, #tpu.memory_space<vmem>>, %arg5: memref<32x128xf32, #tpu.memory_space<vmem>>, %arg6: memref<1x128xf32, #tpu.memory_space<vmem>>, %arg7: memref<1x32xf32, #tpu.memory_space<vmem>>, %arg8: memref<1x1xf32, #tpu.memory_space<vmem>>, %arg9: memref<2x1xf32, #tpu.memory_space<vmem>>, %arg10: memref<16x128xf32, #tpu.memory_space<vmem>>) attributes {dimension_semantics = [], scalar_prefetch = 0 : i64, scratch_operands = 1 : i64, tpu.core_type = #tpu.core_type<tc>} {
    %0 = tpu.iota {dimensions = array<i32: 1>} : vector<2x128xi32>
    %c64_i32 = arith.constant 64 : i32
    %1 = vector.broadcast %c64_i32 : i32 to vector<2x128xi32>
    %2 = arith.cmpi sge, %0, %1 : vector<2x128xi32>
    %c96_i32 = arith.constant 96 : i32
    %3 = vector.broadcast %c96_i32 : i32 to vector<2x128xi32>
    %4 = arith.cmpi slt, %0, %3 : vector<2x128xi32>
    %5 = arith.andi %2, %4 : vector<2x128xi1>
    %c0 = arith.constant 0 : index
    %c0_0 = arith.constant 0 : index
    %6 = vector.load %arg0[%c0, %c0_0] : memref<16x4xf32, #tpu.memory_space<vmem>>, vector<16x4xf32>
    %c0_1 = arith.constant 0 : index
    %c0_2 = arith.constant 0 : index
    %7 = vector.load %arg1[%c0_1, %c0_2] : memref<4x128xf32, #tpu.memory_space<vmem>>, vector<4x128xf32>
    %cst = arith.constant dense<0.000000e+00> : vector<16x128xf32>
    %8 = tpu.matmul %6, %7, %cst {dimension_numbers = #tpu.dot_dimension_numbers<[1], [0], [0], [1], [0, 0, 1, 1], [], []>} : vector<16x4xf32>, vector<4x128xf32>, vector<16x128xf32> -> vector<16x128xf32>
    %c0_3 = arith.constant 0 : index
    %c0_4 = arith.constant 0 : index
    %9 = vector.load %arg3[%c0_3, %c0_4] : memref<1x128xf32, #tpu.memory_space<vmem>>, vector<1x128xf32>
    %10 = vector.broadcast %9 : vector<1x128xf32> to vector<16x128xf32>
    %11 = arith.addf %8, %10 : vector<16x128xf32>
    %c0_5 = arith.constant 0 : index
    %c0_6 = arith.constant 0 : index
    %12 = vector.load %arg10[%c0_5, %c0_6] : memref<16x128xf32, #tpu.memory_space<vmem>>, vector<16x128xf32>
    tpu.vector_store %arg10[%c0_5, %c0_6], %11 {strides = array<i32>} : memref<16x128xf32, #tpu.memory_space<vmem>>, vector<16x128xf32>,
    %c0_7 = arith.constant 0 : index
    %c0_8 = arith.constant 0 : index
    %13 = vector.load %arg2[%c0_7, %c0_8] : memref<32x128xf32, #tpu.memory_space<vmem>>, vector<32x128xf32>
    %cst_9 = arith.constant 0.000000e+00 : f32
    %14 = vector.broadcast %cst_9 : f32 to vector<2x32xf32>
    %cst_10 = arith.constant 0.000000e+00 : f32
    %15 = vector.broadcast %cst_10 : f32 to vector<2x32xf32>
    %c0_11 = arith.constant 0 : index
    %c0_12 = arith.constant 0 : index
    %16 = vector.load %arg10[%c0_11, %c0_12] : memref<16x128xf32, #tpu.memory_space<vmem>>, vector<2x128xf32>
    %cst_13 = arith.constant dense<0.000000e+00> : vector<2x128xf32>
    %17 = tpu.matmul %14, %13, %cst_13 {dimension_numbers = #tpu.dot_dimension_numbers<[1], [0], [0], [1], [0, 0, 1, 1], [], []>} : vector<2x32xf32>, vector<32x128xf32>, vector<2x128xf32> -> vector<2x128xf32>
    %18 = arith.addf %16, %17 : vector<2x128xf32>
    %19 = math.tanh %18 : vector<2x128xf32>
    %20 = arith.negf %18 : vector<2x128xf32>
    %21 = math.exp %20 : vector<2x128xf32>
    %cst_14 = arith.constant 1.000000e+00 : f32
    %22 = vector.broadcast %cst_14 : f32 to vector<2x128xf32>
    %23 = arith.addf %22, %21 : vector<2x128xf32>
    %24 = arith.divf %22, %23 : vector<2x128xf32>
    %25 = arith.select %5, %19, %24 : vector<2x128xi1>, vector<2x128xf32>
    %26 = vector.extract_strided_slice %25 {offsets = [0, 0], sizes = [2, 32], strides = [1, 1]} : vector<2x128xf32> to vector<2x32xf32>
    %27 = vector.extract_strided_slice %25 {offsets = [0, 32], sizes = [2, 32], strides = [1, 1]} : vector<2x128xf32> to vector<2x32xf32>
    %28 = vector.extract_strided_slice %25 {offsets = [0, 64], sizes = [2, 32], strides = [1, 1]} : vector<2x128xf32> to vector<2x32xf32>
    %29 = vector.extract_strided_slice %25 {offsets = [0, 96], sizes = [2, 32], strides = [1, 1]} : vector<2x128xf32> to vector<2x32xf32>
    %30 = arith.mulf %27, %15 : vector<2x32xf32>
    %31 = arith.mulf %26, %28 : vector<2x32xf32>
    %32 = arith.addf %30, %31 : vector<2x32xf32>
    %33 = math.tanh %32 : vector<2x32xf32>
    %34 = arith.mulf %29, %33 : vector<2x32xf32>
    %c2 = arith.constant 2 : index
    %c0_15 = arith.constant 0 : index
    %35 = vector.load %arg10[%c2, %c0_15] : memref<16x128xf32, #tpu.memory_space<vmem>>, vector<2x128xf32>
    %cst_16 = arith.constant dense<0.000000e+00> : vector<2x128xf32>
    %36 = tpu.matmul %34, %13, %cst_16 {dimension_numbers = #tpu.dot_dimension_numbers<[1], [0], [0], [1], [0, 0, 1, 1], [], []>} : vector<2x32xf32>, vector<32x128xf32>, vector<2x128xf32> -> vector<2x128xf32>
    %37 = arith.addf %35, %36 : vector<2x128xf32>
    %38 = math.tanh %37 : vector<2x128xf32>
    %39 = arith.negf %37 : vector<2x128xf32>
    %40 = math.exp %39 : vector<2x128xf32>
    %cst_17 = arith.constant 1.000000e+00 : f32
    %41 = vector.broadcast %cst_17 : f32 to vector<2x128xf32>
    %42 = arith.addf %41, %40 : vector<2x128xf32>
    %43 = arith.divf %41, %42 : vector<2x128xf32>
    %44 = arith.select %5, %38, %43 : vector<2x128xi1>, vector<2x128xf32>
    %45 = vector.extract_strided_slice %44 {offsets = [0, 0], sizes = [2, 32], strides = [1, 1]} : vector<2x128xf32> to vector<2x32xf32>
    %46 = vector.extract_strided_slice %44 {offsets = [0, 32], sizes = [2, 32], strides = [1, 1]} : vector<2x128xf32> to vector<2x32xf32>
    %47 = vector.extract_strided_slice %44 {offsets = [0, 64], sizes = [2, 32], strides = [1, 1]} : vector<2x128xf32> to vector<2x32xf32>
    %48 = vector.extract_strided_slice %44 {offsets = [0, 96], sizes = [2, 32], strides = [1, 1]} : vector<2x128xf32> to vector<2x32xf32>
    %49 = arith.mulf %46, %32 : vector<2x32xf32>
    %50 = arith.mulf %45, %47 : vector<2x32xf32>
    %51 = arith.addf %49, %50 : vector<2x32xf32>
    %52 = math.tanh %51 : vector<2x32xf32>
    %53 = arith.mulf %48, %52 : vector<2x32xf32>
    %c4 = arith.constant 4 : index
    %c0_18 = arith.constant 0 : index
    %54 = vector.load %arg10[%c4, %c0_18] : memref<16x128xf32, #tpu.memory_space<vmem>>, vector<2x128xf32>
    %cst_19 = arith.constant dense<0.000000e+00> : vector<2x128xf32>
    %55 = tpu.matmul %53, %13, %cst_19 {dimension_numbers = #tpu.dot_dimension_numbers<[1], [0], [0], [1], [0, 0, 1, 1], [], []>} : vector<2x32xf32>, vector<32x128xf32>, vector<2x128xf32> -> vector<2x128xf32>
    %56 = arith.addf %54, %55 : vector<2x128xf32>
    %57 = math.tanh %56 : vector<2x128xf32>
    %58 = arith.negf %56 : vector<2x128xf32>
    %59 = math.exp %58 : vector<2x128xf32>
    %cst_20 = arith.constant 1.000000e+00 : f32
    %60 = vector.broadcast %cst_20 : f32 to vector<2x128xf32>
    %61 = arith.addf %60, %59 : vector<2x128xf32>
    %62 = arith.divf %60, %61 : vector<2x128xf32>
    %63 = arith.select %5, %57, %62 : vector<2x128xi1>, vector<2x128xf32>
    %64 = vector.extract_strided_slice %63 {offsets = [0, 0], sizes = [2, 32], strides = [1, 1]} : vector<2x128xf32> to vector<2x32xf32>
    %65 = vector.extract_strided_slice %63 {offsets = [0, 32], sizes = [2, 32], strides = [1, 1]} : vector<2x128xf32> to vector<2x32xf32>
    %66 = vector.extract_strided_slice %63 {offsets = [0, 64], sizes = [2, 32], strides = [1, 1]} : vector<2x128xf32> to vector<2x32xf32>
    %67 = vector.extract_strided_slice %63 {offsets = [0, 96], sizes = [2, 32], strides = [1, 1]} : vector<2x128xf32> to vector<2x32xf32>
    %68 = arith.mulf %65, %51 : vector<2x32xf32>
    %69 = arith.mulf %64, %66 : vector<2x32xf32>
    %70 = arith.addf %68, %69 : vector<2x32xf32>
    %71 = math.tanh %70 : vector<2x32xf32>
    %72 = arith.mulf %67, %71 : vector<2x32xf32>
    %c6 = arith.constant 6 : index
    %c0_21 = arith.constant 0 : index
    %73 = vector.load %arg10[%c6, %c0_21] : memref<16x128xf32, #tpu.memory_space<vmem>>, vector<2x128xf32>
    %cst_22 = arith.constant dense<0.000000e+00> : vector<2x128xf32>
    %74 = tpu.matmul %72, %13, %cst_22 {dimension_numbers = #tpu.dot_dimension_numbers<[1], [0], [0], [1], [0, 0, 1, 1], [], []>} : vector<2x32xf32>, vector<32x128xf32>, vector<2x128xf32> -> vector<2x128xf32>
    %75 = arith.addf %73, %74 : vector<2x128xf32>
    %76 = math.tanh %75 : vector<2x128xf32>
    %77 = arith.negf %75 : vector<2x128xf32>
    %78 = math.exp %77 : vector<2x128xf32>
    %cst_23 = arith.constant 1.000000e+00 : f32
    %79 = vector.broadcast %cst_23 : f32 to vector<2x128xf32>
    %80 = arith.addf %79, %78 : vector<2x128xf32>
    %81 = arith.divf %79, %80 : vector<2x128xf32>
    %82 = arith.select %5, %76, %81 : vector<2x128xi1>, vector<2x128xf32>
    %83 = vector.extract_strided_slice %82 {offsets = [0, 0], sizes = [2, 32], strides = [1, 1]} : vector<2x128xf32> to vector<2x32xf32>
    %84 = vector.extract_strided_slice %82 {offsets = [0, 32], sizes = [2, 32], strides = [1, 1]} : vector<2x128xf32> to vector<2x32xf32>
    %85 = vector.extract_strided_slice %82 {offsets = [0, 64], sizes = [2, 32], strides = [1, 1]} : vector<2x128xf32> to vector<2x32xf32>
    %86 = vector.extract_strided_slice %82 {offsets = [0, 96], sizes = [2, 32], strides = [1, 1]} : vector<2x128xf32> to vector<2x32xf32>
    %87 = arith.mulf %84, %70 : vector<2x32xf32>
    %88 = arith.mulf %83, %85 : vector<2x32xf32>
    %89 = arith.addf %87, %88 : vector<2x32xf32>
    %90 = math.tanh %89 : vector<2x32xf32>
    %91 = arith.mulf %86, %90 : vector<2x32xf32>
    %c8 = arith.constant 8 : index
    %c0_24 = arith.constant 0 : index
    %92 = vector.load %arg10[%c8, %c0_24] : memref<16x128xf32, #tpu.memory_space<vmem>>, vector<2x128xf32>
    %cst_25 = arith.constant dense<0.000000e+00> : vector<2x128xf32>
    %93 = tpu.matmul %91, %13, %cst_25 {dimension_numbers = #tpu.dot_dimension_numbers<[1], [0], [0], [1], [0, 0, 1, 1], [], []>} : vector<2x32xf32>, vector<32x128xf32>, vector<2x128xf32> -> vector<2x128xf32>
    %94 = arith.addf %92, %93 : vector<2x128xf32>
    %95 = math.tanh %94 : vector<2x128xf32>
    %96 = arith.negf %94 : vector<2x128xf32>
    %97 = math.exp %96 : vector<2x128xf32>
    %cst_26 = arith.constant 1.000000e+00 : f32
    %98 = vector.broadcast %cst_26 : f32 to vector<2x128xf32>
    %99 = arith.addf %98, %97 : vector<2x128xf32>
    %100 = arith.divf %98, %99 : vector<2x128xf32>
    %101 = arith.select %5, %95, %100 : vector<2x128xi1>, vector<2x128xf32>
    %102 = vector.extract_strided_slice %101 {offsets = [0, 0], sizes = [2, 32], strides = [1, 1]} : vector<2x128xf32> to vector<2x32xf32>
    %103 = vector.extract_strided_slice %101 {offsets = [0, 32], sizes = [2, 32], strides = [1, 1]} : vector<2x128xf32> to vector<2x32xf32>
    %104 = vector.extract_strided_slice %101 {offsets = [0, 64], sizes = [2, 32], strides = [1, 1]} : vector<2x128xf32> to vector<2x32xf32>
    %105 = vector.extract_strided_slice %101 {offsets = [0, 96], sizes = [2, 32], strides = [1, 1]} : vector<2x128xf32> to vector<2x32xf32>
    %106 = arith.mulf %103, %89 : vector<2x32xf32>
    %107 = arith.mulf %102, %104 : vector<2x32xf32>
    %108 = arith.addf %106, %107 : vector<2x32xf32>
    %109 = math.tanh %108 : vector<2x32xf32>
    %110 = arith.mulf %105, %109 : vector<2x32xf32>
    %c10 = arith.constant 10 : index
    %c0_27 = arith.constant 0 : index
    %111 = vector.load %arg10[%c10, %c0_27] : memref<16x128xf32, #tpu.memory_space<vmem>>, vector<2x128xf32>
    %cst_28 = arith.constant dense<0.000000e+00> : vector<2x128xf32>
    %112 = tpu.matmul %110, %13, %cst_28 {dimension_numbers = #tpu.dot_dimension_numbers<[1], [0], [0], [1], [0, 0, 1, 1], [], []>} : vector<2x32xf32>, vector<32x128xf32>, vector<2x128xf32> -> vector<2x128xf32>
    %113 = arith.addf %111, %112 : vector<2x128xf32>
    %114 = math.tanh %113 : vector<2x128xf32>
    %115 = arith.negf %113 : vector<2x128xf32>
    %116 = math.exp %115 : vector<2x128xf32>
    %cst_29 = arith.constant 1.000000e+00 : f32
    %117 = vector.broadcast %cst_29 : f32 to vector<2x128xf32>
    %118 = arith.addf %117, %116 : vector<2x128xf32>
    %119 = arith.divf %117, %118 : vector<2x128xf32>
    %120 = arith.select %5, %114, %119 : vector<2x128xi1>, vector<2x128xf32>
    %121 = vector.extract_strided_slice %120 {offsets = [0, 0], sizes = [2, 32], strides = [1, 1]} : vector<2x128xf32> to vector<2x32xf32>
    %122 = vector.extract_strided_slice %120 {offsets = [0, 32], sizes = [2, 32], strides = [1, 1]} : vector<2x128xf32> to vector<2x32xf32>
    %123 = vector.extract_strided_slice %120 {offsets = [0, 64], sizes = [2, 32], strides = [1, 1]} : vector<2x128xf32> to vector<2x32xf32>
    %124 = vector.extract_strided_slice %120 {offsets = [0, 96], sizes = [2, 32], strides = [1, 1]} : vector<2x128xf32> to vector<2x32xf32>
    %125 = arith.mulf %122, %108 : vector<2x32xf32>
    %126 = arith.mulf %121, %123 : vector<2x32xf32>
    %127 = arith.addf %125, %126 : vector<2x32xf32>
    %128 = math.tanh %127 : vector<2x32xf32>
    %129 = arith.mulf %124, %128 : vector<2x32xf32>
    %c12 = arith.constant 12 : index
    %c0_30 = arith.constant 0 : index
    %130 = vector.load %arg10[%c12, %c0_30] : memref<16x128xf32, #tpu.memory_space<vmem>>, vector<2x128xf32>
    %cst_31 = arith.constant dense<0.000000e+00> : vector<2x128xf32>
    %131 = tpu.matmul %129, %13, %cst_31 {dimension_numbers = #tpu.dot_dimension_numbers<[1], [0], [0], [1], [0, 0, 1, 1], [], []>} : vector<2x32xf32>, vector<32x128xf32>, vector<2x128xf32> -> vector<2x128xf32>
    %132 = arith.addf %130, %131 : vector<2x128xf32>
    %133 = math.tanh %132 : vector<2x128xf32>
    %134 = arith.negf %132 : vector<2x128xf32>
    %135 = math.exp %134 : vector<2x128xf32>
    %cst_32 = arith.constant 1.000000e+00 : f32
    %136 = vector.broadcast %cst_32 : f32 to vector<2x128xf32>
    %137 = arith.addf %136, %135 : vector<2x128xf32>
    %138 = arith.divf %136, %137 : vector<2x128xf32>
    %139 = arith.select %5, %133, %138 : vector<2x128xi1>, vector<2x128xf32>
    %140 = vector.extract_strided_slice %139 {offsets = [0, 0], sizes = [2, 32], strides = [1, 1]} : vector<2x128xf32> to vector<2x32xf32>
    %141 = vector.extract_strided_slice %139 {offsets = [0, 32], sizes = [2, 32], strides = [1, 1]} : vector<2x128xf32> to vector<2x32xf32>
    %142 = vector.extract_strided_slice %139 {offsets = [0, 64], sizes = [2, 32], strides = [1, 1]} : vector<2x128xf32> to vector<2x32xf32>
    %143 = vector.extract_strided_slice %139 {offsets = [0, 96], sizes = [2, 32], strides = [1, 1]} : vector<2x128xf32> to vector<2x32xf32>
    %144 = arith.mulf %141, %127 : vector<2x32xf32>
    %145 = arith.mulf %140, %142 : vector<2x32xf32>
    %146 = arith.addf %144, %145 : vector<2x32xf32>
    %147 = math.tanh %146 : vector<2x32xf32>
    %148 = arith.mulf %143, %147 : vector<2x32xf32>
    %c14 = arith.constant 14 : index
    %c0_33 = arith.constant 0 : index
    %149 = vector.load %arg10[%c14, %c0_33] : memref<16x128xf32, #tpu.memory_space<vmem>>, vector<2x128xf32>
    %cst_34 = arith.constant dense<0.000000e+00> : vector<2x128xf32>
    %150 = tpu.matmul %148, %13, %cst_34 {dimension_numbers = #tpu.dot_dimension_numbers<[1], [0], [0], [1], [0, 0, 1, 1], [], []>} : vector<2x32xf32>, vector<32x128xf32>, vector<2x128xf32> -> vector<2x128xf32>
    %151 = arith.addf %149, %150 : vector<2x128xf32>
    %152 = math.tanh %151 : vector<2x128xf32>
    %153 = arith.negf %151 : vector<2x128xf32>
    %154 = math.exp %153 : vector<2x128xf32>
    %cst_35 = arith.constant 1.000000e+00 : f32
    %155 = vector.broadcast %cst_35 : f32 to vector<2x128xf32>
    %156 = arith.addf %155, %154 : vector<2x128xf32>
    %157 = arith.divf %155, %156 : vector<2x128xf32>
    %158 = arith.select %5, %152, %157 : vector<2x128xi1>, vector<2x128xf32>
    %159 = vector.extract_strided_slice %158 {offsets = [0, 0], sizes = [2, 32], strides = [1, 1]} : vector<2x128xf32> to vector<2x32xf32>
    %160 = vector.extract_strided_slice %158 {offsets = [0, 32], sizes = [2, 32], strides = [1, 1]} : vector<2x128xf32> to vector<2x32xf32>
    %161 = vector.extract_strided_slice %158 {offsets = [0, 64], sizes = [2, 32], strides = [1, 1]} : vector<2x128xf32> to vector<2x32xf32>
    %162 = vector.extract_strided_slice %158 {offsets = [0, 96], sizes = [2, 32], strides = [1, 1]} : vector<2x128xf32> to vector<2x32xf32>
    %163 = arith.mulf %160, %146 : vector<2x32xf32>
    %164 = arith.mulf %159, %161 : vector<2x32xf32>
    %165 = arith.addf %163, %164 : vector<2x32xf32>
    %166 = math.tanh %165 : vector<2x32xf32>
    %167 = arith.mulf %162, %166 : vector<2x32xf32>
    %168 = tpu.concatenate %34, %53, %72, %91, %110, %129, %148, %167 in 0 : vector<2x32xf32>, vector<2x32xf32>, vector<2x32xf32>, vector<2x32xf32>, vector<2x32xf32>, vector<2x32xf32>, vector<2x32xf32>, vector<2x32xf32> -> vector<16x32xf32>
    %c0_36 = arith.constant 0 : index
    %c0_37 = arith.constant 0 : index
    %169 = vector.load %arg4[%c0_36, %c0_37] : memref<32x128xf32, #tpu.memory_space<vmem>>, vector<32x128xf32>
    %cst_38 = arith.constant dense<0.000000e+00> : vector<16x128xf32>
    %170 = tpu.matmul %168, %169, %cst_38 {dimension_numbers = #tpu.dot_dimension_numbers<[1], [0], [0], [1], [0, 0, 1, 1], [], []>} : vector<16x32xf32>, vector<32x128xf32>, vector<16x128xf32> -> vector<16x128xf32>
    %c0_39 = arith.constant 0 : index
    %c0_40 = arith.constant 0 : index
    %171 = vector.load %arg6[%c0_39, %c0_40] : memref<1x128xf32, #tpu.memory_space<vmem>>, vector<1x128xf32>
    %172 = vector.broadcast %171 : vector<1x128xf32> to vector<16x128xf32>
    %173 = arith.addf %170, %172 : vector<16x128xf32>
    %c0_41 = arith.constant 0 : index
    %c0_42 = arith.constant 0 : index
    %174 = vector.load %arg10[%c0_41, %c0_42] : memref<16x128xf32, #tpu.memory_space<vmem>>, vector<16x128xf32>
    tpu.vector_store %arg10[%c0_41, %c0_42], %173 {strides = array<i32>} : memref<16x128xf32, #tpu.memory_space<vmem>>, vector<16x128xf32>,
    %c0_43 = arith.constant 0 : index
    %c0_44 = arith.constant 0 : index
    %175 = vector.load %arg5[%c0_43, %c0_44] : memref<32x128xf32, #tpu.memory_space<vmem>>, vector<32x128xf32>
    %cst_45 = arith.constant 0.000000e+00 : f32
    %176 = vector.broadcast %cst_45 : f32 to vector<2x32xf32>
    %cst_46 = arith.constant 0.000000e+00 : f32
    %177 = vector.broadcast %cst_46 : f32 to vector<2x32xf32>
    %c0_47 = arith.constant 0 : index
    %c0_48 = arith.constant 0 : index
    %178 = vector.load %arg10[%c0_47, %c0_48] : memref<16x128xf32, #tpu.memory_space<vmem>>, vector<2x128xf32>
    %cst_49 = arith.constant dense<0.000000e+00> : vector<2x128xf32>
    %179 = tpu.matmul %176, %175, %cst_49 {dimension_numbers = #tpu.dot_dimension_numbers<[1], [0], [0], [1], [0, 0, 1, 1], [], []>} : vector<2x32xf32>, vector<32x128xf32>, vector<2x128xf32> -> vector<2x128xf32>
    %180 = arith.addf %178, %179 : vector<2x128xf32>
    %181 = math.tanh %180 : vector<2x128xf32>
    %182 = arith.negf %180 : vector<2x128xf32>
    %183 = math.exp %182 : vector<2x128xf32>
    %cst_50 = arith.constant 1.000000e+00 : f32
    %184 = vector.broadcast %cst_50 : f32 to vector<2x128xf32>
    %185 = arith.addf %184, %183 : vector<2x128xf32>
    %186 = arith.divf %184, %185 : vector<2x128xf32>
    %187 = arith.select %5, %181, %186 : vector<2x128xi1>, vector<2x128xf32>
    %188 = vector.extract_strided_slice %187 {offsets = [0, 0], sizes = [2, 32], strides = [1, 1]} : vector<2x128xf32> to vector<2x32xf32>
    %189 = vector.extract_strided_slice %187 {offsets = [0, 32], sizes = [2, 32], strides = [1, 1]} : vector<2x128xf32> to vector<2x32xf32>
    %190 = vector.extract_strided_slice %187 {offsets = [0, 64], sizes = [2, 32], strides = [1, 1]} : vector<2x128xf32> to vector<2x32xf32>
    %191 = vector.extract_strided_slice %187 {offsets = [0, 96], sizes = [2, 32], strides = [1, 1]} : vector<2x128xf32> to vector<2x32xf32>
    %192 = arith.mulf %189, %177 : vector<2x32xf32>
    %193 = arith.mulf %188, %190 : vector<2x32xf32>
    %194 = arith.addf %192, %193 : vector<2x32xf32>
    %195 = math.tanh %194 : vector<2x32xf32>
    %196 = arith.mulf %191, %195 : vector<2x32xf32>
    %c2_51 = arith.constant 2 : index
    %c0_52 = arith.constant 0 : index
    %197 = vector.load %arg10[%c2_51, %c0_52] : memref<16x128xf32, #tpu.memory_space<vmem>>, vector<2x128xf32>
    %cst_53 = arith.constant dense<0.000000e+00> : vector<2x128xf32>
    %198 = tpu.matmul %196, %175, %cst_53 {dimension_numbers = #tpu.dot_dimension_numbers<[1], [0], [0], [1], [0, 0, 1, 1], [], []>} : vector<2x32xf32>, vector<32x128xf32>, vector<2x128xf32> -> vector<2x128xf32>
    %199 = arith.addf %197, %198 : vector<2x128xf32>
    %200 = math.tanh %199 : vector<2x128xf32>
    %201 = arith.negf %199 : vector<2x128xf32>
    %202 = math.exp %201 : vector<2x128xf32>
    %cst_54 = arith.constant 1.000000e+00 : f32
    %203 = vector.broadcast %cst_54 : f32 to vector<2x128xf32>
    %204 = arith.addf %203, %202 : vector<2x128xf32>
    %205 = arith.divf %203, %204 : vector<2x128xf32>
    %206 = arith.select %5, %200, %205 : vector<2x128xi1>, vector<2x128xf32>
    %207 = vector.extract_strided_slice %206 {offsets = [0, 0], sizes = [2, 32], strides = [1, 1]} : vector<2x128xf32> to vector<2x32xf32>
    %208 = vector.extract_strided_slice %206 {offsets = [0, 32], sizes = [2, 32], strides = [1, 1]} : vector<2x128xf32> to vector<2x32xf32>
    %209 = vector.extract_strided_slice %206 {offsets = [0, 64], sizes = [2, 32], strides = [1, 1]} : vector<2x128xf32> to vector<2x32xf32>
    %210 = vector.extract_strided_slice %206 {offsets = [0, 96], sizes = [2, 32], strides = [1, 1]} : vector<2x128xf32> to vector<2x32xf32>
    %211 = arith.mulf %208, %194 : vector<2x32xf32>
    %212 = arith.mulf %207, %209 : vector<2x32xf32>
    %213 = arith.addf %211, %212 : vector<2x32xf32>
    %214 = math.tanh %213 : vector<2x32xf32>
    %215 = arith.mulf %210, %214 : vector<2x32xf32>
    %c4_55 = arith.constant 4 : index
    %c0_56 = arith.constant 0 : index
    %216 = vector.load %arg10[%c4_55, %c0_56] : memref<16x128xf32, #tpu.memory_space<vmem>>, vector<2x128xf32>
    %cst_57 = arith.constant dense<0.000000e+00> : vector<2x128xf32>
    %217 = tpu.matmul %215, %175, %cst_57 {dimension_numbers = #tpu.dot_dimension_numbers<[1], [0], [0], [1], [0, 0, 1, 1], [], []>} : vector<2x32xf32>, vector<32x128xf32>, vector<2x128xf32> -> vector<2x128xf32>
    %218 = arith.addf %216, %217 : vector<2x128xf32>
    %219 = math.tanh %218 : vector<2x128xf32>
    %220 = arith.negf %218 : vector<2x128xf32>
    %221 = math.exp %220 : vector<2x128xf32>
    %cst_58 = arith.constant 1.000000e+00 : f32
    %222 = vector.broadcast %cst_58 : f32 to vector<2x128xf32>
    %223 = arith.addf %222, %221 : vector<2x128xf32>
    %224 = arith.divf %222, %223 : vector<2x128xf32>
    %225 = arith.select %5, %219, %224 : vector<2x128xi1>, vector<2x128xf32>
    %226 = vector.extract_strided_slice %225 {offsets = [0, 0], sizes = [2, 32], strides = [1, 1]} : vector<2x128xf32> to vector<2x32xf32>
    %227 = vector.extract_strided_slice %225 {offsets = [0, 32], sizes = [2, 32], strides = [1, 1]} : vector<2x128xf32> to vector<2x32xf32>
    %228 = vector.extract_strided_slice %225 {offsets = [0, 64], sizes = [2, 32], strides = [1, 1]} : vector<2x128xf32> to vector<2x32xf32>
    %229 = vector.extract_strided_slice %225 {offsets = [0, 96], sizes = [2, 32], strides = [1, 1]} : vector<2x128xf32> to vector<2x32xf32>
    %230 = arith.mulf %227, %213 : vector<2x32xf32>
    %231 = arith.mulf %226, %228 : vector<2x32xf32>
    %232 = arith.addf %230, %231 : vector<2x32xf32>
    %233 = math.tanh %232 : vector<2x32xf32>
    %234 = arith.mulf %229, %233 : vector<2x32xf32>
    %c6_59 = arith.constant 6 : index
    %c0_60 = arith.constant 0 : index
    %235 = vector.load %arg10[%c6_59, %c0_60] : memref<16x128xf32, #tpu.memory_space<vmem>>, vector<2x128xf32>
    %cst_61 = arith.constant dense<0.000000e+00> : vector<2x128xf32>
    %236 = tpu.matmul %234, %175, %cst_61 {dimension_numbers = #tpu.dot_dimension_numbers<[1], [0], [0], [1], [0, 0, 1, 1], [], []>} : vector<2x32xf32>, vector<32x128xf32>, vector<2x128xf32> -> vector<2x128xf32>
    %237 = arith.addf %235, %236 : vector<2x128xf32>
    %238 = math.tanh %237 : vector<2x128xf32>
    %239 = arith.negf %237 : vector<2x128xf32>
    %240 = math.exp %239 : vector<2x128xf32>
    %cst_62 = arith.constant 1.000000e+00 : f32
    %241 = vector.broadcast %cst_62 : f32 to vector<2x128xf32>
    %242 = arith.addf %241, %240 : vector<2x128xf32>
    %243 = arith.divf %241, %242 : vector<2x128xf32>
    %244 = arith.select %5, %238, %243 : vector<2x128xi1>, vector<2x128xf32>
    %245 = vector.extract_strided_slice %244 {offsets = [0, 0], sizes = [2, 32], strides = [1, 1]} : vector<2x128xf32> to vector<2x32xf32>
    %246 = vector.extract_strided_slice %244 {offsets = [0, 32], sizes = [2, 32], strides = [1, 1]} : vector<2x128xf32> to vector<2x32xf32>
    %247 = vector.extract_strided_slice %244 {offsets = [0, 64], sizes = [2, 32], strides = [1, 1]} : vector<2x128xf32> to vector<2x32xf32>
    %248 = vector.extract_strided_slice %244 {offsets = [0, 96], sizes = [2, 32], strides = [1, 1]} : vector<2x128xf32> to vector<2x32xf32>
    %249 = arith.mulf %246, %232 : vector<2x32xf32>
    %250 = arith.mulf %245, %247 : vector<2x32xf32>
    %251 = arith.addf %249, %250 : vector<2x32xf32>
    %252 = math.tanh %251 : vector<2x32xf32>
    %253 = arith.mulf %248, %252 : vector<2x32xf32>
    %c8_63 = arith.constant 8 : index
    %c0_64 = arith.constant 0 : index
    %254 = vector.load %arg10[%c8_63, %c0_64] : memref<16x128xf32, #tpu.memory_space<vmem>>, vector<2x128xf32>
    %cst_65 = arith.constant dense<0.000000e+00> : vector<2x128xf32>
    %255 = tpu.matmul %253, %175, %cst_65 {dimension_numbers = #tpu.dot_dimension_numbers<[1], [0], [0], [1], [0, 0, 1, 1], [], []>} : vector<2x32xf32>, vector<32x128xf32>, vector<2x128xf32> -> vector<2x128xf32>
    %256 = arith.addf %254, %255 : vector<2x128xf32>
    %257 = math.tanh %256 : vector<2x128xf32>
    %258 = arith.negf %256 : vector<2x128xf32>
    %259 = math.exp %258 : vector<2x128xf32>
    %cst_66 = arith.constant 1.000000e+00 : f32
    %260 = vector.broadcast %cst_66 : f32 to vector<2x128xf32>
    %261 = arith.addf %260, %259 : vector<2x128xf32>
    %262 = arith.divf %260, %261 : vector<2x128xf32>
    %263 = arith.select %5, %257, %262 : vector<2x128xi1>, vector<2x128xf32>
    %264 = vector.extract_strided_slice %263 {offsets = [0, 0], sizes = [2, 32], strides = [1, 1]} : vector<2x128xf32> to vector<2x32xf32>
    %265 = vector.extract_strided_slice %263 {offsets = [0, 32], sizes = [2, 32], strides = [1, 1]} : vector<2x128xf32> to vector<2x32xf32>
    %266 = vector.extract_strided_slice %263 {offsets = [0, 64], sizes = [2, 32], strides = [1, 1]} : vector<2x128xf32> to vector<2x32xf32>
    %267 = vector.extract_strided_slice %263 {offsets = [0, 96], sizes = [2, 32], strides = [1, 1]} : vector<2x128xf32> to vector<2x32xf32>
    %268 = arith.mulf %265, %251 : vector<2x32xf32>
    %269 = arith.mulf %264, %266 : vector<2x32xf32>
    %270 = arith.addf %268, %269 : vector<2x32xf32>
    %271 = math.tanh %270 : vector<2x32xf32>
    %272 = arith.mulf %267, %271 : vector<2x32xf32>
    %c10_67 = arith.constant 10 : index
    %c0_68 = arith.constant 0 : index
    %273 = vector.load %arg10[%c10_67, %c0_68] : memref<16x128xf32, #tpu.memory_space<vmem>>, vector<2x128xf32>
    %cst_69 = arith.constant dense<0.000000e+00> : vector<2x128xf32>
    %274 = tpu.matmul %272, %175, %cst_69 {dimension_numbers = #tpu.dot_dimension_numbers<[1], [0], [0], [1], [0, 0, 1, 1], [], []>} : vector<2x32xf32>, vector<32x128xf32>, vector<2x128xf32> -> vector<2x128xf32>
    %275 = arith.addf %273, %274 : vector<2x128xf32>
    %276 = math.tanh %275 : vector<2x128xf32>
    %277 = arith.negf %275 : vector<2x128xf32>
    %278 = math.exp %277 : vector<2x128xf32>
    %cst_70 = arith.constant 1.000000e+00 : f32
    %279 = vector.broadcast %cst_70 : f32 to vector<2x128xf32>
    %280 = arith.addf %279, %278 : vector<2x128xf32>
    %281 = arith.divf %279, %280 : vector<2x128xf32>
    %282 = arith.select %5, %276, %281 : vector<2x128xi1>, vector<2x128xf32>
    %283 = vector.extract_strided_slice %282 {offsets = [0, 0], sizes = [2, 32], strides = [1, 1]} : vector<2x128xf32> to vector<2x32xf32>
    %284 = vector.extract_strided_slice %282 {offsets = [0, 32], sizes = [2, 32], strides = [1, 1]} : vector<2x128xf32> to vector<2x32xf32>
    %285 = vector.extract_strided_slice %282 {offsets = [0, 64], sizes = [2, 32], strides = [1, 1]} : vector<2x128xf32> to vector<2x32xf32>
    %286 = vector.extract_strided_slice %282 {offsets = [0, 96], sizes = [2, 32], strides = [1, 1]} : vector<2x128xf32> to vector<2x32xf32>
    %287 = arith.mulf %284, %270 : vector<2x32xf32>
    %288 = arith.mulf %283, %285 : vector<2x32xf32>
    %289 = arith.addf %287, %288 : vector<2x32xf32>
    %290 = math.tanh %289 : vector<2x32xf32>
    %291 = arith.mulf %286, %290 : vector<2x32xf32>
    %c12_71 = arith.constant 12 : index
    %c0_72 = arith.constant 0 : index
    %292 = vector.load %arg10[%c12_71, %c0_72] : memref<16x128xf32, #tpu.memory_space<vmem>>, vector<2x128xf32>
    %cst_73 = arith.constant dense<0.000000e+00> : vector<2x128xf32>
    %293 = tpu.matmul %291, %175, %cst_73 {dimension_numbers = #tpu.dot_dimension_numbers<[1], [0], [0], [1], [0, 0, 1, 1], [], []>} : vector<2x32xf32>, vector<32x128xf32>, vector<2x128xf32> -> vector<2x128xf32>
    %294 = arith.addf %292, %293 : vector<2x128xf32>
    %295 = math.tanh %294 : vector<2x128xf32>
    %296 = arith.negf %294 : vector<2x128xf32>
    %297 = math.exp %296 : vector<2x128xf32>
    %cst_74 = arith.constant 1.000000e+00 : f32
    %298 = vector.broadcast %cst_74 : f32 to vector<2x128xf32>
    %299 = arith.addf %298, %297 : vector<2x128xf32>
    %300 = arith.divf %298, %299 : vector<2x128xf32>
    %301 = arith.select %5, %295, %300 : vector<2x128xi1>, vector<2x128xf32>
    %302 = vector.extract_strided_slice %301 {offsets = [0, 0], sizes = [2, 32], strides = [1, 1]} : vector<2x128xf32> to vector<2x32xf32>
    %303 = vector.extract_strided_slice %301 {offsets = [0, 32], sizes = [2, 32], strides = [1, 1]} : vector<2x128xf32> to vector<2x32xf32>
    %304 = vector.extract_strided_slice %301 {offsets = [0, 64], sizes = [2, 32], strides = [1, 1]} : vector<2x128xf32> to vector<2x32xf32>
    %305 = vector.extract_strided_slice %301 {offsets = [0, 96], sizes = [2, 32], strides = [1, 1]} : vector<2x128xf32> to vector<2x32xf32>
    %306 = arith.mulf %303, %289 : vector<2x32xf32>
    %307 = arith.mulf %302, %304 : vector<2x32xf32>
    %308 = arith.addf %306, %307 : vector<2x32xf32>
    %309 = math.tanh %308 : vector<2x32xf32>
    %310 = arith.mulf %305, %309 : vector<2x32xf32>
    %c14_75 = arith.constant 14 : index
    %c0_76 = arith.constant 0 : index
    %311 = vector.load %arg10[%c14_75, %c0_76] : memref<16x128xf32, #tpu.memory_space<vmem>>, vector<2x128xf32>
    %cst_77 = arith.constant dense<0.000000e+00> : vector<2x128xf32>
    %312 = tpu.matmul %310, %175, %cst_77 {dimension_numbers = #tpu.dot_dimension_numbers<[1], [0], [0], [1], [0, 0, 1, 1], [], []>} : vector<2x32xf32>, vector<32x128xf32>, vector<2x128xf32> -> vector<2x128xf32>
    %313 = arith.addf %311, %312 : vector<2x128xf32>
    %314 = math.tanh %313 : vector<2x128xf32>
    %315 = arith.negf %313 : vector<2x128xf32>
    %316 = math.exp %315 : vector<2x128xf32>
    %cst_78 = arith.constant 1.000000e+00 : f32
    %317 = vector.broadcast %cst_78 : f32 to vector<2x128xf32>
    %318 = arith.addf %317, %316 : vector<2x128xf32>
    %319 = arith.divf %317, %318 : vector<2x128xf32>
    %320 = arith.select %5, %314, %319 : vector<2x128xi1>, vector<2x128xf32>
    %321 = vector.extract_strided_slice %320 {offsets = [0, 0], sizes = [2, 32], strides = [1, 1]} : vector<2x128xf32> to vector<2x32xf32>
    %322 = vector.extract_strided_slice %320 {offsets = [0, 32], sizes = [2, 32], strides = [1, 1]} : vector<2x128xf32> to vector<2x32xf32>
    %323 = vector.extract_strided_slice %320 {offsets = [0, 64], sizes = [2, 32], strides = [1, 1]} : vector<2x128xf32> to vector<2x32xf32>
    %324 = vector.extract_strided_slice %320 {offsets = [0, 96], sizes = [2, 32], strides = [1, 1]} : vector<2x128xf32> to vector<2x32xf32>
    %325 = arith.mulf %322, %308 : vector<2x32xf32>
    %326 = arith.mulf %321, %323 : vector<2x32xf32>
    %327 = arith.addf %325, %326 : vector<2x32xf32>
    %328 = math.tanh %327 : vector<2x32xf32>
    %329 = arith.mulf %324, %328 : vector<2x32xf32>
    %c0_79 = arith.constant 0 : index
    %c0_80 = arith.constant 0 : index
    %330 = vector.load %arg7[%c0_79, %c0_80] : memref<1x32xf32, #tpu.memory_space<vmem>>, vector<1x32xf32>
    %331 = vector.broadcast %330 : vector<1x32xf32> to vector<2x32xf32>
    %332 = arith.mulf %329, %331 : vector<2x32xf32>
    %cst_81 = arith.constant dense<0.000000e+00> : vector<2xf32>
    %333 = vector.multi_reduction <add>, %332, %cst_81 [1] : vector<2x32xf32> to vector<2xf32>
    %334 = vector.shape_cast %333 : vector<2xf32> to vector<2x1xf32>
    %c0_82 = arith.constant 0 : index
    %c0_83 = arith.constant 0 : index
    %335 = vector.load %arg8[%c0_82, %c0_83] : memref<1x1xf32, #tpu.memory_space<vmem>>, vector<1x1xf32>
    %336 = vector.broadcast %335 : vector<1x1xf32> to vector<2x1xf32>
    %337 = arith.addf %334, %336 : vector<2x1xf32>
    %c0_84 = arith.constant 0 : index
    %c0_85 = arith.constant 0 : index
    %338 = vector.load %arg9[%c0_84, %c0_85] : memref<2x1xf32, #tpu.memory_space<vmem>>, vector<2x1xf32>
    tpu.vector_store %arg9[%c0_84, %c0_85], %337 {strides = array<i32>} : memref<2x1xf32, #tpu.memory_space<vmem>>, vector<2x1xf32>,
    return
  }
}

</mosaic_0001>

<llo_original>
// kernel: lstm_forward.1
$region0: #{lstm_forward.1}
  #allocation0 [shape = 'u32[]', space=smem, size = 0x4, offset = 0x4, fixed_abs, tag = 'smem constant byte address 0x4 - core index']
  #allocation1 [shape = 'u32[144,128]{1,0:T(1,128)}', space=vmem, size = 0x12000, scoped, tag = 'internal scratch']
  #allocation2 [shape = 'f32[16,128]{1,0:T(8,128)}', space=vmem, size = 0x2000, scoped, tag = 'scratch operand']
  #allocation3 [shape = 'f32[1,1]{1,0:T(1,128)S(1)}', space=vmem, size = 0x200, scoped, tag = 'scoped memory for lstm_forward.1']
  %s0 = inlined_call_operand.vmem [shape: f32[16,4], index: 0, kind: input, shape index: {}]
  %s1 = inlined_call_operand.hbm [shape: f32[4,128], index: 1, kind: input, shape index: {}]
  %s2 = inlined_call_operand.vmem [shape: f32[32,128], index: 2, kind: input, shape index: {}]
  %s3 = inlined_call_operand.vmem [shape: f32[1,128], index: 3, kind: input, shape index: {}]
  %s4 = inlined_call_operand.hbm [shape: f32[32,128], index: 4, kind: input, shape index: {}]
  %s5 = inlined_call_operand.hbm [shape: f32[32,128], index: 5, kind: input, shape index: {}]
  %s6 = inlined_call_operand.vmem [shape: f32[1,128], index: 6, kind: input, shape index: {}]
  %s7 = inlined_call_operand.vmem [shape: f32[1,32], index: 7, kind: input, shape index: {}]
  %s8 = inlined_call_operand.<no memory space> [shape: f32[1,1], index: 8, kind: input, shape index: {}]
  %s9 = inlined_call_operand.vmem [shape: f32[2,1], index: 9, kind: output, shape index: {}]
  %s10 = sld [smem:[#allocation0]]
  $region58: #{lstm_forward.1} parent=0
    _
  %s12 = ssub.s32 1, %s10
  %s13 = scalar_select 0, %s12, %s10
  %v14 = vstv %s8
  %15 = vst [vmem:[#allocation3] sm:$0x1] %v14
  $region1: #{lstm_forward.1} parent=0
    #allocation4 [shape = 'u8[2048]{0}', space=vmem, size = 0x800, scoped, tag = 'input window, operand 1, single buffered']
    #allocation5 [shape = 's32[1]{0}', space=sflag, size = 0x4, scoped, tag = 'scoped memory for lstm_forward.1']
    #allocation6 [shape = 'u8[16384]{0}', space=vmem, size = 0x4000, scoped, tag = 'input window, operand 4, single buffered']
    #allocation7 [shape = 's32[1]{0}', space=sflag, size = 0x4, scoped, tag = 'scoped memory for lstm_forward.1']
    #allocation8 [shape = 'u8[16384]{0}', space=vmem, size = 0x4000, scoped, tag = 'input window, operand 5, single buffered']
    %16 = vsyncpa [#allocation5], 0
    %17 = vsyncpa [#allocation7], 0
    // Predicated region
    $region2: #{lstm_forward.1} parent=1 // pred_check
      _
    $region3: #{lstm_forward.1} parent=1 // pred_check_branch
      %19 = sbr.rel (0) target = $region5
    $region4: #{lstm_forward.1} parent=1 // pred_region
      _
    $region5: #{lstm_forward.1} parent=1 // pred_fallthru
      _
    // Predicated region
    $region6: #{lstm_forward.1} parent=1 // pred_check
      _
    $region7: #{lstm_forward.1} parent=1 // pred_check_branch
      %21 = sbr.rel (0) target = $region9
    $region8: #{lstm_forward.1} parent=1 // pred_region
      %s23 = ssub.s32 64, 64
      %24 = vsyncadd [#allocation5], %s23
      %s26 = sshll.u32 [#allocation4], 4
      %s27 = int_to_ptr.vmem [resolvable:$true] %s26
      %29 = dma.hbm_to_vmem [thread:$0]  %s1, 64, %s27, [#allocation5]
    $region9: #{lstm_forward.1} parent=1 // pred_fallthru
      _
    // Predicated region
    $region10: #{lstm_forward.1} parent=1 // pred_check
      _
    $region11: #{lstm_forward.1} parent=1 // pred_check_branch
      %31 = sbr.rel (0) target = $region13
    $region12: #{lstm_forward.1} parent=1 // pred_region
      _
    $region13: #{lstm_forward.1} parent=1 // pred_fallthru
      _
    // Predicated region
    $region14: #{lstm_forward.1} parent=1 // pred_check
      _
    $region15: #{lstm_forward.1} parent=1 // pred_check_branch
      %33 = sbr.rel (0) target = $region17
    $region16: #{lstm_forward.1} parent=1 // pred_region
      _
    $region17: #{lstm_forward.1} parent=1 // pred_fallthru
      _
    // Predicated region
    $region18: #{lstm_forward.1} parent=1 // pred_check
      _
    $region19: #{lstm_forward.1} parent=1 // pred_check_branch
      %35 = sbr.rel (0) target = $region21
    $region20: #{lstm_forward.1} parent=1 // pred_region
      %s37 = ssub.s32 512, 512
      %38 = vsyncadd [#allocation7], %s37
      %s39 = sshll.u32 [#allocation6], 4
      %s40 = int_to_ptr.vmem [resolvable:$true] %s39
      %45 = dma.hbm_to_vmem [thread:$0]  %s4, 512, %s40, [#allocation7], 128, 128, 8
    $region21: #{lstm_forward.1} parent=1 // pred_fallthru
      _
    // Predicated region
    $region22: #{lstm_forward.1} parent=1 // pred_check
      _
    $region23: #{lstm_forward.1} parent=1 // pred_check_branch
      %47 = sbr.rel (0) target = $region25
    $region24: #{lstm_forward.1} parent=1 // pred_region
      %s49 = ssub.s32 512, 512
      %50 = vsyncadd [#allocation7], %s49
      %s51 = sshll.u32 [#allocation8], 4
      %s52 = int_to_ptr.vmem [resolvable:$true] %s51
      %57 = dma.hbm_to_vmem [thread:$0]  %s5, 512, %s52, [#allocation7], 128, 128, 8
    $region25: #{lstm_forward.1} parent=1 // pred_fallthru
      _
    // Predicated region
    $region26: #{lstm_forward.1} parent=1 // pred_check
      _
    $region27: #{lstm_forward.1} parent=1 // pred_check_branch
      %59 = sbr.rel (0) target = $region29
    $region28: #{lstm_forward.1} parent=1 // pred_region
      _
    $region29: #{lstm_forward.1} parent=1 // pred_fallthru
      _
    // Predicated region
    $region30: #{lstm_forward.1} parent=1 // pred_check
      _
    $region31: #{lstm_forward.1} parent=1 // pred_check_branch
      %61 = sbr.rel (0) target = $region33
    $region32: #{lstm_forward.1} parent=1 // pred_region
      _
    $region33: #{lstm_forward.1} parent=1 // pred_fallthru
      _
    // Predicated region
    $region34: #{lstm_forward.1} parent=1 // pred_check
      _
    $region35: #{lstm_forward.1} parent=1 // pred_check_branch
      %63 = sbr.rel (0) target = $region37
    $region36: #{lstm_forward.1} parent=1 // pred_region
      _
    $region37: #{lstm_forward.1} parent=1 // pred_fallthru
      _
    // Predicated region
    $region38: #{lstm_forward.1} parent=1 // pred_check
      _
    $region39: #{lstm_forward.1} parent=1 // pred_check_branch
      %65 = sbr.rel (0) target = $region41
    $region40: #{lstm_forward.1} parent=1 // pred_region
      %66 = dma.done [#allocation5], 64
    $region41: #{lstm_forward.1} parent=1 // pred_fallthru
      _
    // Predicated region
    $region42: #{lstm_forward.1} parent=1 // pred_check
      _
    $region43: #{lstm_forward.1} parent=1 // pred_check_branch
      %68 = sbr.rel (0) target = $region45
    $region44: #{lstm_forward.1} parent=1 // pred_region
      %69 = dma.done [#allocation7], 512
    $region45: #{lstm_forward.1} parent=1 // pred_fallthru
      _
    // Predicated region
    $region46: #{lstm_forward.1} parent=1 // pred_check
      _
    $region47: #{lstm_forward.1} parent=1 // pred_check_branch
      %71 = sbr.rel (0) target = $region49
    $region48: #{lstm_forward.1} parent=1 // pred_region
      %72 = dma.done [#allocation7], 512
    $region49: #{lstm_forward.1} parent=1 // pred_fallthru
      _
    %v73 = vlaneseq
    %v74 = vand.u32 %v73, 127
    %vm75 = vcmp.ge.s32.totalorder %v74, 64
    %vm76 = vcmp.lt.s32.totalorder %v74, 96
    %vm77 = vmand %vm75, %vm76
    %v78 = vld [vmem:[%s0] sm:$0xff]
    %v79 = vld [vmem:[%s0 + $0x8] sm:$0xff]
    %v80 = vld [vmem:[#allocation4] sm:$0xf]
    %v81 = vld [vmem:[%s3] sm:$0x1]
    %v83 = vlaneseq
    %v84 = vshrl.u32 %v83, 7
    %v85 = vsub.s32 0, %v84
    %v86 = vrot.slane %v81, %v85
    %vm88 = vcmask 31744
    %v90 = vsel %vm88, %v78, 0
    %v93 = vsel %vm88, %v79, 0
    %vm95 = vcmask 1043456
    %v97 = vsel %vm95, %v80, 0
    %99 = vmatprep.subr.mxu0 0.0
    %100 = vmatpush1.msra.mxu0 %v97
    %101 = vmatprep.subr.mxu0 0.0
    %102 = vmatpush1.msra.mxu0 0.0
    %103 = vmatprep.subr.mxu0 0.0
    %104 = vmatpush1.msra.mxu0 0.0
    %105 = vmatprep.subr.mxu0 0.0
    %106 = vmatpush1.msra.mxu0 0.0
    %107 = vmatprep.subr.mxu0 0.0
    %108 = vmatpush1.msra.mxu0 0.0
    %109 = vmatprep.subr.mxu0 0.0
    %110 = vmatpush1.msra.mxu0 0.0
    %111 = vmatprep.subr.mxu0 0.0
    %112 = vmatpush1.msra.mxu0 0.0
    %113 = vmatprep.subr.mxu0 0.0
    %114 = vmatpush1.msra.mxu0 0.0
    %115 = vmatprep.subr.mxu0 0.0
    %116 = vmatpush1.msra.mxu0 0.0
    %117 = vmatprep.subr.mxu0 0.0
    %118 = vmatpush1.msra.mxu0 0.0
    %119 = vmatprep.subr.mxu0 0.0
    %120 = vmatpush1.msra.mxu0 0.0
    %121 = vmatprep.subr.mxu0 0.0
    %122 = vmatpush1.msra.mxu0 0.0
    %123 = vmatprep.subr.mxu0 0.0
    %124 = vmatpush1.msra.mxu0 0.0
    %125 = vmatprep.subr.mxu0 0.0
    %126 = vmatpush1.msra.mxu0 0.0
    %127 = vmatprep.subr.mxu0 0.0
    %128 = vmatpush1.msra.mxu0 0.0
    %129 = vmatprep.subr.mxu0 0.0
    %130 = vmatpush1.msra.mxu0 0.0
    %131 = vmatprep.subr.mxu0 0.0
    %132 = vmatpush1.msra.mxu0 0.0
    %133 = vmatprep.subr.mxu0 0.0
    %134 = vmatpush1.msra.mxu0 0.0
    %135 = vmatprep.subr.mxu0 0.0
    %136 = vmatpush1.msra.mxu0 0.0
    %137 = vmatprep.subr.mxu0 0.0
    %138 = vmatpush1.msra.mxu0 0.0
    %139 = vmatprep.subr.mxu0 0.0
    %140 = vmatpush1.msra.mxu0 0.0
    %141 = vmatprep.subr.mxu0 0.0
    %142 = vmatpush1.msra.mxu0 0.0
    %143 = vmatprep.subr.mxu0 0.0
    %144 = vmatpush1.msra.mxu0 0.0
    %145 = vmatprep.subr.mxu0 0.0
    %146 = vmatpush1.msra.mxu0 0.0
    %147 = vmatprep.subr.mxu0 0.0
    %148 = vmatpush1.msra.mxu0 0.0
    %149 = vmatprep.subr.mxu0 0.0
    %150 = vmatpush1.msra.mxu0 0.0
    %151 = vmatprep.subr.mxu0 0.0
    %152 = vmatpush1.msra.mxu0 0.0
    %153 = vmatprep.subr.mxu0 0.0
    %154 = vmatpush1.msra.mxu0 0.0
    %155 = vmatprep.subr.mxu0 0.0
    %156 = vmatpush1.msra.mxu0 0.0
    %157 = vmatprep.subr.mxu0 0.0
    %158 = vmatpush1.msra.mxu0 0.0
    %159 = vmatprep.subr.mxu0 0.0
    %160 = vmatpush1.msra.mxu0 0.0
    %161 = vmatprep.subr.mxu0 0.0
    %162 = vmatpush1.msra.mxu0 0.0
    %163 = vmatprep.mubr.f32.mxu0 0.0
    %164 = vmatmul.mubr.f32.gmra.mrb[0].mxu0 %v90
    %v165 = vpop.f32.mrb[0].mxu0
    %v166 = vadd.f32 %v86, %v165
    %v167 = vpop.f32.mrb[0].mxu0
    %168 = vmatprep.mubr.f32.mxu0 0.0
    %169 = vmatmul.mubr.f32.gmra.mrb[0].mxu0 %v93
    %v170 = vpop.f32.mrb[0].mxu0
    %v171 = vadd.f32 %v86, %v170
    %v172 = vpop.f32.mrb[0].mxu0
    %173 = vdwg.mxu0
    %174 = vst [vmem:[#allocation2] sm:$0xff] %v166
    %175 = vst [vmem:[#allocation2 + $0x8] sm:$0xff] %v171
    %v176 = vld [vmem:[%s2] sm:$0xff]
    %v177 = vld [vmem:[%s2 + $0x8] sm:$0xff]
    %v178 = vld [vmem:[%s2 + $0x10] sm:$0xff]
    %v179 = vld [vmem:[%s2 + $0x18] sm:$0xff]
    %v180 = vld [vmem:[#allocation2] sm:$0x3]
    %vm181 = vcmask 261120
    %v183 = vsel %vm181, 0.0, 0
    %185 = vmatprep.subr.mxu0 0.0
    %186 = vmatpush1.msra.mxu0 %v176
    %187 = vmatprep.subr.mxu0 0.0
    %188 = vmatpush1.msra.mxu0 %v177
    %189 = vmatprep.subr.mxu0 0.0
    %190 = vmatpush1.msra.mxu0 %v178
    %191 = vmatprep.subr.mxu0 0.0
    %192 = vmatpush1.msra.mxu0 %v179
    %193 = vmatprep.subr.mxu0 0.0
    %194 = vmatpush1.msra.mxu0 0.0
    %195 = vmatprep.subr.mxu0 0.0
    %196 = vmatpush1.msra.mxu0 0.0
    %197 = vmatprep.subr.mxu0 0.0
    %198 = vmatpush1.msra.mxu0 0.0
    %199 = vmatprep.subr.mxu0 0.0
    %200 = vmatpush1.msra.mxu0 0.0
    %201 = vmatprep.subr.mxu0 0.0
    %202 = vmatpush1.msra.mxu0 0.0
    %203 = vmatprep.subr.mxu0 0.0
    %204 = vmatpush1.msra.mxu0 0.0
    %205 = vmatprep.subr.mxu0 0.0
    %206 = vmatpush1.msra.mxu0 0.0
    %207 = vmatprep.subr.mxu0 0.0
    %208 = vmatpush1.msra.mxu0 0.0
    %209 = vmatprep.subr.mxu0 0.0
    %210 = vmatpush1.msra.mxu0 0.0
    %211 = vmatprep.subr.mxu0 0.0
    %212 = vmatpush1.msra.mxu0 0.0
    %213 = vmatprep.subr.mxu0 0.0
    %214 = vmatpush1.msra.mxu0 0.0
    %215 = vmatprep.subr.mxu0 0.0
    %216 = vmatpush1.msra.mxu0 0.0
    %217 = vmatprep.subr.mxu0 0.0
    %218 = vmatpush1.msra.mxu0 0.0
    %219 = vmatprep.subr.mxu0 0.0
    %220 = vmatpush1.msra.mxu0 0.0
    %221 = vmatprep.subr.mxu0 0.0
    %222 = vmatpush1.msra.mxu0 0.0
    %223 = vmatprep.subr.mxu0 0.0
    %224 = vmatpush1.msra.mxu0 0.0
    %225 = vmatprep.subr.mxu0 0.0
    %226 = vmatpush1.msra.mxu0 0.0
    %227 = vmatprep.subr.mxu0 0.0
    %228 = vmatpush1.msra.mxu0 0.0
    %229 = vmatprep.subr.mxu0 0.0
    %230 = vmatpush1.msra.mxu0 0.0
    %231 = vmatprep.subr.mxu0 0.0
    %232 = vmatpush1.msra.mxu0 0.0
    %233 = vmatprep.subr.mxu0 0.0
    %234 = vmatpush1.msra.mxu0 0.0
    %235 = vmatprep.subr.mxu0 0.0
    %236 = vmatpush1.msra.mxu0 0.0
    %237 = vmatprep.subr.mxu0 0.0
    %238 = vmatpush1.msra.mxu0 0.0
    %239 = vmatprep.subr.mxu0 0.0
    %240 = vmatpush1.msra.mxu0 0.0
    %241 = vmatprep.subr.mxu0 0.0
    %242 = vmatpush1.msra.mxu0 0.0
    %243 = vmatprep.subr.mxu0 0.0
    %244 = vmatpush1.msra.mxu0 0.0
    %245 = vmatprep.subr.mxu0 0.0
    %246 = vmatpush1.msra.mxu0 0.0
    %247 = vmatprep.subr.mxu0 0.0
    %248 = vmatpush1.msra.mxu0 0.0
    %249 = vmatprep.mubr.f32.mxu0 0.0
    %250 = vmatmul.mubr.f32.gmra.mrb[0].mxu0 %v183
    %v251 = vpop.f32.mrb[0].mxu0
    %v252 = vadd.f32 0.0, %v251
    %v253 = vpop.f32.mrb[0].mxu0
    %254 = vdwg.mxu0
    %v255 = vadd.f32 %v180, %v252
    %v256 = vtanh.pop %v255
    %v257 = vxor.u32 %v255, 2147483648
    %v258 = vmul.f32 %v257, 1.442695
    %v259 = vpow.pop %v258
    %v260 = vadd.f32 %v259, 1.0
    %v261 = vrcp.pop %v260
    %v262 = vmul.f32 1.0, %v261
    %v263 = vsel %vm77, %v256, %v262
    %v264 = vmul.f32 %v263, 0.0
    %266 = vrot.lane.b32.xlu0 %v263, 64
    %v267 = vpop.permute.xlu0 %266
    %v269 = vmul.f32 %v263, %v267
    %271 = vrot.lane.b32.xlu0 %v269, 32
    %v272 = vpop.permute.xlu0 %271
    %v274 = vadd.f32 %v264, %v272
    %v275 = vtanh.pop %v274
    %277 = vrot.lane.b32.xlu0 %v275, 64
    %v278 = vpop.permute.xlu0 %277
    %v280 = vmul.f32 %v263, %v278
    %v281 = vld [vmem:[#allocation2 + $0x2] sm:$0x3]
    %283 = vrot.lane.b32.xlu0 %v280, 32
    %v284 = vpop.permute.xlu0 %283
    %v285 = vsel %vm181, %v284, 0
    %287 = vmatprep.subr.mxu0 0.0
    %288 = vmatpush1.msra.mxu0 %v176
    %289 = vmatprep.subr.mxu0 0.0
    %290 = vmatpush1.msra.mxu0 %v177
    %291 = vmatprep.subr.mxu0 0.0
    %292 = vmatpush1.msra.mxu0 %v178
    %293 = vmatprep.subr.mxu0 0.0
    %294 = vmatpush1.msra.mxu0 %v179
    %295 = vmatprep.subr.mxu0 0.0
    %296 = vmatpush1.msra.mxu0 0.0
    %297 = vmatprep.subr.mxu0 0.0
    %298 = vmatpush1.msra.mxu0 0.0
    %299 = vmatprep.subr.mxu0 0.0
    %300 = vmatpush1.msra.mxu0 0.0
    %301 = vmatprep.subr.mxu0 0.0
    %302 = vmatpush1.msra.mxu0 0.0
    %303 = vmatprep.subr.mxu0 0.0
    %304 = vmatpush1.msra.mxu0 0.0
    %305 = vmatprep.subr.mxu0 0.0
    %306 = vmatpush1.msra.mxu0 0.0
    %307 = vmatprep.subr.mxu0 0.0
    %308 = vmatpush1.msra.mxu0 0.0
    %309 = vmatprep.subr.mxu0 0.0
    %310 = vmatpush1.msra.mxu0 0.0
    %311 = vmatprep.subr.mxu0 0.0
    %312 = vmatpush1.msra.mxu0 0.0
    %313 = vmatprep.subr.mxu0 0.0
    %314 = vmatpush1.msra.mxu0 0.0
    %315 = vmatprep.subr.mxu0 0.0
    %316 = vmatpush1.msra.mxu0 0.0
    %317 = vmatprep.subr.mxu0 0.0
    %318 = vmatpush1.msra.mxu0 0.0
    %319 = vmatprep.subr.mxu0 0.0
    %320 = vmatpush1.msra.mxu0 0.0
    %321 = vmatprep.subr.mxu0 0.0
    %322 = vmatpush1.msra.mxu0 0.0
    %323 = vmatprep.subr.mxu0 0.0
    %324 = vmatpush1.msra.mxu0 0.0
    %325 = vmatprep.subr.mxu0 0.0
    %326 = vmatpush1.msra.mxu0 0.0
    %327 = vmatprep.subr.mxu0 0.0
    %328 = vmatpush1.msra.mxu0 0.0
    %329 = vmatprep.subr.mxu0 0.0
    %330 = vmatpush1.msra.mxu0 0.0
    %331 = vmatprep.subr.mxu0 0.0
    %332 = vmatpush1.msra.mxu0 0.0
    %333 = vmatprep.subr.mxu0 0.0
    %334 = vmatpush1.msra.mxu0 0.0
    %335 = vmatprep.subr.mxu0 0.0
    %336 = vmatpush1.msra.mxu0 0.0
    %337 = vmatprep.subr.mxu0 0.0
    %338 = vmatpush1.msra.mxu0 0.0
    %339 = vmatprep.subr.mxu0 0.0
    %340 = vmatpush1.msra.mxu0 0.0
    %341 = vmatprep.subr.mxu0 0.0
    %342 = vmatpush1.msra.mxu0 0.0
    %343 = vmatprep.subr.mxu0 0.0
    %344 = vmatpush1.msra.mxu0 0.0
    %345 = vmatprep.subr.mxu0 0.0
    %346 = vmatpush1.msra.mxu0 0.0
    %347 = vmatprep.subr.mxu0 0.0
    %348 = vmatpush1.msra.mxu0 0.0
    %349 = vmatprep.subr.mxu0 0.0
    %350 = vmatpush1.msra.mxu0 0.0
    %351 = vmatprep.mubr.f32.mxu0 0.0
    %352 = vmatmul.mubr.f32.gmra.mrb[0].mxu0 %v285
    %v353 = vpop.f32.mrb[0].mxu0
    %v354 = vadd.f32 0.0, %v353
    %v355 = vpop.f32.mrb[0].mxu0
    %356 = vdwg.mxu0
    %v357 = vadd.f32 %v281, %v354
    %v358 = vtanh.pop %v357
    %v359 = vxor.u32 %v357, 2147483648
    %v360 = vmul.f32 %v359, 1.442695
    %v361 = vpow.pop %v360
    %v362 = vadd.f32 %v361, 1.0
    %v363 = vrcp.pop %v362
    %v364 = vmul.f32 1.0, %v363
    %v365 = vsel %vm77, %v358, %v364
    %v366 = vmul.f32 %v365, %v274
    %368 = vrot.lane.b32.xlu0 %v365, 64
    %v369 = vpop.permute.xlu0 %368
    %v371 = vmul.f32 %v365, %v369
    %373 = vrot.lane.b32.xlu0 %v371, 32
    %v374 = vpop.permute.xlu0 %373
    %v376 = vadd.f32 %v366, %v374
    %v377 = vtanh.pop %v376
    %379 = vrot.lane.b32.xlu0 %v377, 64
    %v380 = vpop.permute.xlu0 %379
    %v382 = vmul.f32 %v365, %v380
    %v383 = vld [vmem:[#allocation2 + $0x4] sm:$0x3]
    %385 = vrot.lane.b32.xlu0 %v382, 32
    %v386 = vpop.permute.xlu0 %385
    %v387 = vsel %vm181, %v386, 0
    %389 = vmatprep.subr.mxu0 0.0
    %390 = vmatpush1.msra.mxu0 %v176
    %391 = vmatprep.subr.mxu0 0.0
    %392 = vmatpush1.msra.mxu0 %v177
    %393 = vmatprep.subr.mxu0 0.0
    %394 = vmatpush1.msra.mxu0 %v178
    %395 = vmatprep.subr.mxu0 0.0
    %396 = vmatpush1.msra.mxu0 %v179
    %397 = vmatprep.subr.mxu0 0.0
    %398 = vmatpush1.msra.mxu0 0.0
    %399 = vmatprep.subr.mxu0 0.0
    %400 = vmatpush1.msra.mxu0 0.0
    %401 = vmatprep.subr.mxu0 0.0
    %402 = vmatpush1.msra.mxu0 0.0
    %403 = vmatprep.subr.mxu0 0.0
    %404 = vmatpush1.msra.mxu0 0.0
    %405 = vmatprep.subr.mxu0 0.0
    %406 = vmatpush1.msra.mxu0 0.0
    %407 = vmatprep.subr.mxu0 0.0
    %408 = vmatpush1.msra.mxu0 0.0
    %409 = vmatprep.subr.mxu0 0.0
    %410 = vmatpush1.msra.mxu0 0.0
    %411 = vmatprep.subr.mxu0 0.0
    %412 = vmatpush1.msra.mxu0 0.0
    %413 = vmatprep.subr.mxu0 0.0
    %414 = vmatpush1.msra.mxu0 0.0
    %415 = vmatprep.subr.mxu0 0.0
    %416 = vmatpush1.msra.mxu0 0.0
    %417 = vmatprep.subr.mxu0 0.0
    %418 = vmatpush1.msra.mxu0 0.0
    %419 = vmatprep.subr.mxu0 0.0
    %420 = vmatpush1.msra.mxu0 0.0
    %421 = vmatprep.subr.mxu0 0.0
    %422 = vmatpush1.msra.mxu0 0.0
    %423 = vmatprep.subr.mxu0 0.0
    %424 = vmatpush1.msra.mxu0 0.0
    %425 = vmatprep.subr.mxu0 0.0
    %426 = vmatpush1.msra.mxu0 0.0
    %427 = vmatprep.subr.mxu0 0.0
    %428 = vmatpush1.msra.mxu0 0.0
    %429 = vmatprep.subr.mxu0 0.0
    %430 = vmatpush1.msra.mxu0 0.0
    %431 = vmatprep.subr.mxu0 0.0
    %432 = vmatpush1.msra.mxu0 0.0
    %433 = vmatprep.subr.mxu0 0.0
    %434 = vmatpush1.msra.mxu0 0.0
    %435 = vmatprep.subr.mxu0 0.0
    %436 = vmatpush1.msra.mxu0 0.0
    %437 = vmatprep.subr.mxu0 0.0
    %438 = vmatpush1.msra.mxu0 0.0
    %439 = vmatprep.subr.mxu0 0.0
    %440 = vmatpush1.msra.mxu0 0.0
    %441 = vmatprep.subr.mxu0 0.0
    %442 = vmatpush1.msra.mxu0 0.0
    %443 = vmatprep.subr.mxu0 0.0
    %444 = vmatpush1.msra.mxu0 0.0
    %445 = vmatprep.subr.mxu0 0.0
    %446 = vmatpush1.msra.mxu0 0.0
    %447 = vmatprep.subr.mxu0 0.0
    %448 = vmatpush1.msra.mxu0 0.0
    %449 = vmatprep.subr.mxu0 0.0
    %450 = vmatpush1.msra.mxu0 0.0
    %451 = vmatprep.subr.mxu0 0.0
    %452 = vmatpush1.msra.mxu0 0.0
    %453 = vmatprep.mubr.f32.mxu0 0.0
    %454 = vmatmul.mubr.f32.gmra.mrb[0].mxu0 %v387
    %v455 = vpop.f32.mrb[0].mxu0
    %v456 = vadd.f32 0.0, %v455
    %v457 = vpop.f32.mrb[0].mxu0
    %458 = vdwg.mxu0
    %v459 = vadd.f32 %v383, %v456
    %v460 = vtanh.pop %v459
    %v461 = vxor.u32 %v459, 2147483648
    %v462 = vmul.f32 %v461, 1.442695
    %v463 = vpow.pop %v462
    %v464 = vadd.f32 %v463, 1.0
    %v465 = vrcp.pop %v464
    %v466 = vmul.f32 1.0, %v465
    %v467 = vsel %vm77, %v460, %v466
    %v468 = vmul.f32 %v467, %v376
    %470 = vrot.lane.b32.xlu0 %v467, 64
    %v471 = vpop.permute.xlu0 %470
    %v473 = vmul.f32 %v467, %v471
    %475 = vrot.lane.b32.xlu0 %v473, 32
    %v476 = vpop.permute.xlu0 %475
    %v478 = vadd.f32 %v468, %v476
    %v479 = vtanh.pop %v478
    %481 = vrot.lane.b32.xlu0 %v479, 64
    %v482 = vpop.permute.xlu0 %481
    %v484 = vmul.f32 %v467, %v482
    %v485 = vld [vmem:[#allocation2 + $0x6] sm:$0x3]
    %487 = vrot.lane.b32.xlu0 %v484, 32
    %v488 = vpop.permute.xlu0 %487
    %v489 = vsel %vm181, %v488, 0
    %491 = vmatprep.subr.mxu0 0.0
    %492 = vmatpush1.msra.mxu0 %v176
    %493 = vmatprep.subr.mxu0 0.0
    %494 = vmatpush1.msra.mxu0 %v177
    %495 = vmatprep.subr.mxu0 0.0
    %496 = vmatpush1.msra.mxu0 %v178
    %497 = vmatprep.subr.mxu0 0.0
    %498 = vmatpush1.msra.mxu0 %v179
    %499 = vmatprep.subr.mxu0 0.0
    %500 = vmatpush1.msra.mxu0 0.0
    %501 = vmatprep.subr.mxu0 0.0
    %502 = vmatpush1.msra.mxu0 0.0
    %503 = vmatprep.subr.mxu0 0.0
    %504 = vmatpush1.msra.mxu0 0.0
    %505 = vmatprep.subr.mxu0 0.0
    %506 = vmatpush1.msra.mxu0 0.0
    %507 = vmatprep.subr.mxu0 0.0
    %508 = vmatpush1.msra.mxu0 0.0
    %509 = vmatprep.subr.mxu0 0.0
    %510 = vmatpush1.msra.mxu0 0.0
    %511 = vmatprep.subr.mxu0 0.0
    %512 = vmatpush1.msra.mxu0 0.0
    %513 = vmatprep.subr.mxu0 0.0
    %514 = vmatpush1.msra.mxu0 0.0
    %515 = vmatprep.subr.mxu0 0.0
    %516 = vmatpush1.msra.mxu0 0.0
    %517 = vmatprep.subr.mxu0 0.0
    %518 = vmatpush1.msra.mxu0 0.0
    %519 = vmatprep.subr.mxu0 0.0
    %520 = vmatpush1.msra.mxu0 0.0
    %521 = vmatprep.subr.mxu0 0.0
    %522 = vmatpush1.msra.mxu0 0.0
    %523 = vmatprep.subr.mxu0 0.0
    %524 = vmatpush1.msra.mxu0 0.0
    %525 = vmatprep.subr.mxu0 0.0
    %526 = vmatpush1.msra.mxu0 0.0
    %527 = vmatprep.subr.mxu0 0.0
    %528 = vmatpush1.msra.mxu0 0.0
    %529 = vmatprep.subr.mxu0 0.0
    %530 = vmatpush1.msra.mxu0 0.0
    %531 = vmatprep.subr.mxu0 0.0
    %532 = vmatpush1.msra.mxu0 0.0
    %533 = vmatprep.subr.mxu0 0.0
    %534 = vmatpush1.msra.mxu0 0.0
    %535 = vmatprep.subr.mxu0 0.0
    %536 = vmatpush1.msra.mxu0 0.0
    %537 = vmatprep.subr.mxu0 0.0
    %538 = vmatpush1.msra.mxu0 0.0
    %539 = vmatprep.subr.mxu0 0.0
    %540 = vmatpush1.msra.mxu0 0.0
    %541 = vmatprep.subr.mxu0 0.0
    %542 = vmatpush1.msra.mxu0 0.0
    %543 = vmatprep.subr.mxu0 0.0
    %544 = vmatpush1.msra.mxu0 0.0
    %545 = vmatprep.subr.mxu0 0.0
    %546 = vmatpush1.msra.mxu0 0.0
    %547 = vmatprep.subr.mxu0 0.0
    %548 = vmatpush1.msra.mxu0 0.0
    %549 = vmatprep.subr.mxu0 0.0
    %550 = vmatpush1.msra.mxu0 0.0
    %551 = vmatprep.subr.mxu0 0.0
    %552 = vmatpush1.msra.mxu0 0.0
    %553 = vmatprep.subr.mxu0 0.0
    %554 = vmatpush1.msra.mxu0 0.0
    %555 = vmatprep.mubr.f32.mxu0 0.0
    %556 = vmatmul.mubr.f32.gmra.mrb[0].mxu0 %v489
    %v557 = vpop.f32.mrb[0].mxu0
    %v558 = vadd.f32 0.0, %v557
    %v559 = vpop.f32.mrb[0].mxu0
    %560 = vdwg.mxu0
    %v561 = vadd.f32 %v485, %v558
    %v562 = vtanh.pop %v561
    %v563 = vxor.u32 %v561, 2147483648
    %v564 = vmul.f32 %v563, 1.442695
    %v565 = vpow.pop %v564
    %v566 = vadd.f32 %v565, 1.0
    %v567 = vrcp.pop %v566
    %v568 = vmul.f32 1.0, %v567
    %v569 = vsel %vm77, %v562, %v568
    %v570 = vmul.f32 %v569, %v478
    %572 = vrot.lane.b32.xlu0 %v569, 64
    %v573 = vpop.permute.xlu0 %572
    %v575 = vmul.f32 %v569, %v573
    %577 = vrot.lane.b32.xlu0 %v575, 32
    %v578 = vpop.permute.xlu0 %577
    %v580 = vadd.f32 %v570, %v578
    %v581 = vtanh.pop %v580
    %583 = vrot.lane.b32.xlu0 %v581, 64
    %v584 = vpop.permute.xlu0 %583
    %v586 = vmul.f32 %v569, %v584
    %v587 = vld [vmem:[#allocation2 + $0x8] sm:$0x3]
    %589 = vrot.lane.b32.xlu0 %v586, 32
    %v590 = vpop.permute.xlu0 %589
    %v591 = vsel %vm181, %v590, 0
    %593 = vmatprep.subr.mxu0 0.0
    %594 = vmatpush1.msra.mxu0 %v176
    %595 = vmatprep.subr.mxu0 0.0
    %596 = vmatpush1.msra.mxu0 %v177
    %597 = vmatprep.subr.mxu0 0.0
    %598 = vmatpush1.msra.mxu0 %v178
    %599 = vmatprep.subr.mxu0 0.0
    %600 = vmatpush1.msra.mxu0 %v179
    %601 = vmatprep.subr.mxu0 0.0
    %602 = vmatpush1.msra.mxu0 0.0
    %603 = vmatprep.subr.mxu0 0.0
    %604 = vmatpush1.msra.mxu0 0.0
    %605 = vmatprep.subr.mxu0 0.0
    %606 = vmatpush1.msra.mxu0 0.0
    %607 = vmatprep.subr.mxu0 0.0
    %608 = vmatpush1.msra.mxu0 0.0
    %609 = vmatprep.subr.mxu0 0.0
    %610 = vmatpush1.msra.mxu0 0.0
    %611 = vmatprep.subr.mxu0 0.0
    %612 = vmatpush1.msra.mxu0 0.0
    %613 = vmatprep.subr.mxu0 0.0
    %614 = vmatpush1.msra.mxu0 0.0
    %615 = vmatprep.subr.mxu0 0.0
    %616 = vmatpush1.msra.mxu0 0.0
    %617 = vmatprep.subr.mxu0 0.0
    %618 = vmatpush1.msra.mxu0 0.0
    %619 = vmatprep.subr.mxu0 0.0
    %620 = vmatpush1.msra.mxu0 0.0
    %621 = vmatprep.subr.mxu0 0.0
    %622 = vmatpush1.msra.mxu0 0.0
    %623 = vmatprep.subr.mxu0 0.0
    %624 = vmatpush1.msra.mxu0 0.0
    %625 = vmatprep.subr.mxu0 0.0
    %626 = vmatpush1.msra.mxu0 0.0
    %627 = vmatprep.subr.mxu0 0.0
    %628 = vmatpush1.msra.mxu0 0.0
    %629 = vmatprep.subr.mxu0 0.0
    %630 = vmatpush1.msra.mxu0 0.0
    %631 = vmatprep.subr.mxu0 0.0
    %632 = vmatpush1.msra.mxu0 0.0
    %633 = vmatprep.subr.mxu0 0.0
    %634 = vmatpush1.msra.mxu0 0.0
    %635 = vmatprep.subr.mxu0 0.0
    %636 = vmatpush1.msra.mxu0 0.0
    %637 = vmatprep.subr.mxu0 0.0
    %638 = vmatpush1.msra.mxu0 0.0
    %639 = vmatprep.subr.mxu0 0.0
    %640 = vmatpush1.msra.mxu0 0.0
    %641 = vmatprep.subr.mxu0 0.0
    %642 = vmatpush1.msra.mxu0 0.0
    %643 = vmatprep.subr.mxu0 0.0
    %644 = vmatpush1.msra.mxu0 0.0
    %645 = vmatprep.subr.mxu0 0.0
    %646 = vmatpush1.msra.mxu0 0.0
    %647 = vmatprep.subr.mxu0 0.0
    %648 = vmatpush1.msra.mxu0 0.0
    %649 = vmatprep.subr.mxu0 0.0
    %650 = vmatpush1.msra.mxu0 0.0
    %651 = vmatprep.subr.mxu0 0.0
    %652 = vmatpush1.msra.mxu0 0.0
    %653 = vmatprep.subr.mxu0 0.0
    %654 = vmatpush1.msra.mxu0 0.0
    %655 = vmatprep.subr.mxu0 0.0
    %656 = vmatpush1.msra.mxu0 0.0
    %657 = vmatprep.mubr.f32.mxu0 0.0
    %658 = vmatmul.mubr.f32.gmra.mrb[0].mxu0 %v591
    %v659 = vpop.f32.mrb[0].mxu0
    %v660 = vadd.f32 0.0, %v659
    %v661 = vpop.f32.mrb[0].mxu0
    %662 = vdwg.mxu0
    %v663 = vadd.f32 %v587, %v660
    %v664 = vtanh.pop %v663
    %v665 = vxor.u32 %v663, 2147483648
    %v666 = vmul.f32 %v665, 1.442695
    %v667 = vpow.pop %v666
    %v668 = vadd.f32 %v667, 1.0
    %v669 = vrcp.pop %v668
    %v670 = vmul.f32 1.0, %v669
    %v671 = vsel %vm77, %v664, %v670
    %v672 = vmul.f32 %v671, %v580
    %674 = vrot.lane.b32.xlu0 %v671, 64
    %v675 = vpop.permute.xlu0 %674
    %v677 = vmul.f32 %v671, %v675
    %679 = vrot.lane.b32.xlu0 %v677, 32
    %v680 = vpop.permute.xlu0 %679
    %v682 = vadd.f32 %v672, %v680
    %v683 = vtanh.pop %v682
    %685 = vrot.lane.b32.xlu0 %v683, 64
    %v686 = vpop.permute.xlu0 %685
    %v688 = vmul.f32 %v671, %v686
    %v689 = vld [vmem:[#allocation2 + $0xa] sm:$0x3]
    %691 = vrot.lane.b32.xlu0 %v688, 32
    %v692 = vpop.permute.xlu0 %691
    %v693 = vsel %vm181, %v692, 0
    %695 = vmatprep.subr.mxu0 0.0
    %696 = vmatpush1.msra.mxu0 %v176
    %697 = vmatprep.subr.mxu0 0.0
    %698 = vmatpush1.msra.mxu0 %v177
    %699 = vmatprep.subr.mxu0 0.0
    %700 = vmatpush1.msra.mxu0 %v178
    %701 = vmatprep.subr.mxu0 0.0
    %702 = vmatpush1.msra.mxu0 %v179
    %703 = vmatprep.subr.mxu0 0.0
    %704 = vmatpush1.msra.mxu0 0.0
    %705 = vmatprep.subr.mxu0 0.0
    %706 = vmatpush1.msra.mxu0 0.0
    %707 = vmatprep.subr.mxu0 0.0
    %708 = vmatpush1.msra.mxu0 0.0
    %709 = vmatprep.subr.mxu0 0.0
    %710 = vmatpush1.msra.mxu0 0.0
    %711 = vmatprep.subr.mxu0 0.0
    %712 = vmatpush1.msra.mxu0 0.0
    %713 = vmatprep.subr.mxu0 0.0
    %714 = vmatpush1.msra.mxu0 0.0
    %715 = vmatprep.subr.mxu0 0.0
    %716 = vmatpush1.msra.mxu0 0.0
    %717 = vmatprep.subr.mxu0 0.0
    %718 = vmatpush1.msra.mxu0 0.0
    %719 = vmatprep.subr.mxu0 0.0
    %720 = vmatpush1.msra.mxu0 0.0
    %721 = vmatprep.subr.mxu0 0.0
    %722 = vmatpush1.msra.mxu0 0.0
    %723 = vmatprep.subr.mxu0 0.0
    %724 = vmatpush1.msra.mxu0 0.0
    %725 = vmatprep.subr.mxu0 0.0
    %726 = vmatpush1.msra.mxu0 0.0
    %727 = vmatprep.subr.mxu0 0.0
    %728 = vmatpush1.msra.mxu0 0.0
    %729 = vmatprep.subr.mxu0 0.0
    %730 = vmatpush1.msra.mxu0 0.0
    %731 = vmatprep.subr.mxu0 0.0
    %732 = vmatpush1.msra.mxu0 0.0
    %733 = vmatprep.subr.mxu0 0.0
    %734 = vmatpush1.msra.mxu0 0.0
    %735 = vmatprep.subr.mxu0 0.0
    %736 = vmatpush1.msra.mxu0 0.0
    %737 = vmatprep.subr.mxu0 0.0
    %738 = vmatpush1.msra.mxu0 0.0
    %739 = vmatprep.subr.mxu0 0.0
    %740 = vmatpush1.msra.mxu0 0.0
    %741 = vmatprep.subr.mxu0 0.0
    %742 = vmatpush1.msra.mxu0 0.0
    %743 = vmatprep.subr.mxu0 0.0
    %744 = vmatpush1.msra.mxu0 0.0
    %745 = vmatprep.subr.mxu0 0.0
    %746 = vmatpush1.msra.mxu0 0.0
    %747 = vmatprep.subr.mxu0 0.0
    %748 = vmatpush1.msra.mxu0 0.0
    %749 = vmatprep.subr.mxu0 0.0
    %750 = vmatpush1.msra.mxu0 0.0
    %751 = vmatprep.subr.mxu0 0.0
    %752 = vmatpush1.msra.mxu0 0.0
    %753 = vmatprep.subr.mxu0 0.0
    %754 = vmatpush1.msra.mxu0 0.0
    %755 = vmatprep.subr.mxu0 0.0
    %756 = vmatpush1.msra.mxu0 0.0
    %757 = vmatprep.subr.mxu0 0.0
    %758 = vmatpush1.msra.mxu0 0.0
    %759 = vmatprep.mubr.f32.mxu0 0.0
    %760 = vmatmul.mubr.f32.gmra.mrb[0].mxu0 %v693
    %v761 = vpop.f32.mrb[0].mxu0
    %v762 = vadd.f32 0.0, %v761
    %v763 = vpop.f32.mrb[0].mxu0
    %764 = vdwg.mxu0
    %v765 = vadd.f32 %v689, %v762
    %v766 = vtanh.pop %v765
    %v767 = vxor.u32 %v765, 2147483648
    %v768 = vmul.f32 %v767, 1.442695
    %v769 = vpow.pop %v768
    %v770 = vadd.f32 %v769, 1.0
    %v771 = vrcp.pop %v770
    %v772 = vmul.f32 1.0, %v771
    %v773 = vsel %vm77, %v766, %v772
    %v774 = vmul.f32 %v773, %v682
    %776 = vrot.lane.b32.xlu0 %v773, 64
    %v777 = vpop.permute.xlu0 %776
    %v779 = vmul.f32 %v773, %v777
    %781 = vrot.lane.b32.xlu0 %v779, 32
    %v782 = vpop.permute.xlu0 %781
    %v784 = vadd.f32 %v774, %v782
    %v785 = vtanh.pop %v784
    %787 = vrot.lane.b32.xlu0 %v785, 64
    %v788 = vpop.permute.xlu0 %787
    %v790 = vmul.f32 %v773, %v788
    %v791 = vld [vmem:[#allocation2 + $0xc] sm:$0x3]
    %793 = vrot.lane.b32.xlu0 %v790, 32
    %v794 = vpop.permute.xlu0 %793
    %v795 = vsel %vm181, %v794, 0
    %797 = vmatprep.subr.mxu0 0.0
    %798 = vmatpush1.msra.mxu0 %v176
    %799 = vmatprep.subr.mxu0 0.0
    %800 = vmatpush1.msra.mxu0 %v177
    %801 = vmatprep.subr.mxu0 0.0
    %802 = vmatpush1.msra.mxu0 %v178
    %803 = vmatprep.subr.mxu0 0.0
    %804 = vmatpush1.msra.mxu0 %v179
    %805 = vmatprep.subr.mxu0 0.0
    %806 = vmatpush1.msra.mxu0 0.0
    %807 = vmatprep.subr.mxu0 0.0
    %808 = vmatpush1.msra.mxu0 0.0
    %809 = vmatprep.subr.mxu0 0.0
    %810 = vmatpush1.msra.mxu0 0.0
    %811 = vmatprep.subr.mxu0 0.0
    %812 = vmatpush1.msra.mxu0 0.0
    %813 = vmatprep.subr.mxu0 0.0
    %814 = vmatpush1.msra.mxu0 0.0
    %815 = vmatprep.subr.mxu0 0.0
    %816 = vmatpush1.msra.mxu0 0.0
    %817 = vmatprep.subr.mxu0 0.0
    %818 = vmatpush1.msra.mxu0 0.0
    %819 = vmatprep.subr.mxu0 0.0
    %820 = vmatpush1.msra.mxu0 0.0
    %821 = vmatprep.subr.mxu0 0.0
    %822 = vmatpush1.msra.mxu0 0.0
    %823 = vmatprep.subr.mxu0 0.0
    %824 = vmatpush1.msra.mxu0 0.0
    %825 = vmatprep.subr.mxu0 0.0
    %826 = vmatpush1.msra.mxu0 0.0
    %827 = vmatprep.subr.mxu0 0.0
    %828 = vmatpush1.msra.mxu0 0.0
    %829 = vmatprep.subr.mxu0 0.0
    %830 = vmatpush1.msra.mxu0 0.0
    %831 = vmatprep.subr.mxu0 0.0
    %832 = vmatpush1.msra.mxu0 0.0
    %833 = vmatprep.subr.mxu0 0.0
    %834 = vmatpush1.msra.mxu0 0.0
    %835 = vmatprep.subr.mxu0 0.0
    %836 = vmatpush1.msra.mxu0 0.0
    %837 = vmatprep.subr.mxu0 0.0
    %838 = vmatpush1.msra.mxu0 0.0
    %839 = vmatprep.subr.mxu0 0.0
    %840 = vmatpush1.msra.mxu0 0.0
    %841 = vmatprep.subr.mxu0 0.0
    %842 = vmatpush1.msra.mxu0 0.0
    %843 = vmatprep.subr.mxu0 0.0
    %844 = vmatpush1.msra.mxu0 0.0
    %845 = vmatprep.subr.mxu0 0.0
    %846 = vmatpush1.msra.mxu0 0.0
    %847 = vmatprep.subr.mxu0 0.0
    %848 = vmatpush1.msra.mxu0 0.0
    %849 = vmatprep.subr.mxu0 0.0
    %850 = vmatpush1.msra.mxu0 0.0
    %851 = vmatprep.subr.mxu0 0.0
    %852 = vmatpush1.msra.mxu0 0.0
    %853 = vmatprep.subr.mxu0 0.0
    %854 = vmatpush1.msra.mxu0 0.0
    %855 = vmatprep.subr.mxu0 0.0
    %856 = vmatpush1.msra.mxu0 0.0
    %857 = vmatprep.subr.mxu0 0.0
    %858 = vmatpush1.msra.mxu0 0.0
    %859 = vmatprep.subr.mxu0 0.0
    %860 = vmatpush1.msra.mxu0 0.0
    %861 = vmatprep.mubr.f32.mxu0 0.0
    %862 = vmatmul.mubr.f32.gmra.mrb[0].mxu0 %v795
    %v863 = vpop.f32.mrb[0].mxu0
    %v864 = vadd.f32 0.0, %v863
    %v865 = vpop.f32.mrb[0].mxu0
    %866 = vdwg.mxu0
    %v867 = vadd.f32 %v791, %v864
    %v868 = vtanh.pop %v867
    %v869 = vxor.u32 %v867, 2147483648
    %v870 = vmul.f32 %v869, 1.442695
    %v871 = vpow.pop %v870
    %v872 = vadd.f32 %v871, 1.0
    %v873 = vrcp.pop %v872
    %v874 = vmul.f32 1.0, %v873
    %v875 = vsel %vm77, %v868, %v874
    %v876 = vmul.f32 %v875, %v784
    %878 = vrot.lane.b32.xlu0 %v875, 64
    %v879 = vpop.permute.xlu0 %878
    %v881 = vmul.f32 %v875, %v879
    %883 = vrot.lane.b32.xlu0 %v881, 32
    %v884 = vpop.permute.xlu0 %883
    %v886 = vadd.f32 %v876, %v884
    %v887 = vtanh.pop %v886
    %889 = vrot.lane.b32.xlu0 %v887, 64
    %v890 = vpop.permute.xlu0 %889
    %v892 = vmul.f32 %v875, %v890
    %v893 = vld [vmem:[#allocation2 + $0xe] sm:$0x3]
    %895 = vrot.lane.b32.xlu0 %v892, 32
    %v896 = vpop.permute.xlu0 %895
    %v897 = vsel %vm181, %v896, 0
    %899 = vmatprep.subr.mxu0 0.0
    %900 = vmatpush1.msra.mxu0 %v176
    %901 = vmatprep.subr.mxu0 0.0
    %902 = vmatpush1.msra.mxu0 %v177
    %903 = vmatprep.subr.mxu0 0.0
    %904 = vmatpush1.msra.mxu0 %v178
    %905 = vmatprep.subr.mxu0 0.0
    %906 = vmatpush1.msra.mxu0 %v179
    %907 = vmatprep.subr.mxu0 0.0
    %908 = vmatpush1.msra.mxu0 0.0
    %909 = vmatprep.subr.mxu0 0.0
    %910 = vmatpush1.msra.mxu0 0.0
    %911 = vmatprep.subr.mxu0 0.0
    %912 = vmatpush1.msra.mxu0 0.0
    %913 = vmatprep.subr.mxu0 0.0
    %914 = vmatpush1.msra.mxu0 0.0
    %915 = vmatprep.subr.mxu0 0.0
    %916 = vmatpush1.msra.mxu0 0.0
    %917 = vmatprep.subr.mxu0 0.0
    %918 = vmatpush1.msra.mxu0 0.0
    %919 = vmatprep.subr.mxu0 0.0
    %920 = vmatpush1.msra.mxu0 0.0
    %921 = vmatprep.subr.mxu0 0.0
    %922 = vmatpush1.msra.mxu0 0.0
    %923 = vmatprep.subr.mxu0 0.0
    %924 = vmatpush1.msra.mxu0 0.0
    %925 = vmatprep.subr.mxu0 0.0
    %926 = vmatpush1.msra.mxu0 0.0
    %927 = vmatprep.subr.mxu0 0.0
    %928 = vmatpush1.msra.mxu0 0.0
    %929 = vmatprep.subr.mxu0 0.0
    %930 = vmatpush1.msra.mxu0 0.0
    %931 = vmatprep.subr.mxu0 0.0
    %932 = vmatpush1.msra.mxu0 0.0
    %933 = vmatprep.subr.mxu0 0.0
    %934 = vmatpush1.msra.mxu0 0.0
    %935 = vmatprep.subr.mxu0 0.0
    %936 = vmatpush1.msra.mxu0 0.0
    %937 = vmatprep.subr.mxu0 0.0
    %938 = vmatpush1.msra.mxu0 0.0
    %939 = vmatprep.subr.mxu0 0.0
    %940 = vmatpush1.msra.mxu0 0.0
    %941 = vmatprep.subr.mxu0 0.0
    %942 = vmatpush1.msra.mxu0 0.0
    %943 = vmatprep.subr.mxu0 0.0
    %944 = vmatpush1.msra.mxu0 0.0
    %945 = vmatprep.subr.mxu0 0.0
    %946 = vmatpush1.msra.mxu0 0.0
    %947 = vmatprep.subr.mxu0 0.0
    %948 = vmatpush1.msra.mxu0 0.0
    %949 = vmatprep.subr.mxu0 0.0
    %950 = vmatpush1.msra.mxu0 0.0
    %951 = vmatprep.subr.mxu0 0.0
    %952 = vmatpush1.msra.mxu0 0.0
    %953 = vmatprep.subr.mxu0 0.0
    %954 = vmatpush1.msra.mxu0 0.0
    %955 = vmatprep.subr.mxu0 0.0
    %956 = vmatpush1.msra.mxu0 0.0
    %957 = vmatprep.subr.mxu0 0.0
    %958 = vmatpush1.msra.mxu0 0.0
    %959 = vmatprep.subr.mxu0 0.0
    %960 = vmatpush1.msra.mxu0 0.0
    %961 = vmatprep.subr.mxu0 0.0
    %962 = vmatpush1.msra.mxu0 0.0
    %963 = vmatprep.mubr.f32.mxu0 0.0
    %964 = vmatmul.mubr.f32.gmra.mrb[0].mxu0 %v897
    %v965 = vpop.f32.mrb[0].mxu0
    %v966 = vadd.f32 0.0, %v965
    %v967 = vpop.f32.mrb[0].mxu0
    %968 = vdwg.mxu0
    %v969 = vadd.f32 %v893, %v966
    %v970 = vtanh.pop %v969
    %v971 = vxor.u32 %v969, 2147483648
    %v972 = vmul.f32 %v971, 1.442695
    %v973 = vpow.pop %v972
    %v974 = vadd.f32 %v973, 1.0
    %v975 = vrcp.pop %v974
    %v976 = vmul.f32 1.0, %v975
    %v977 = vsel %vm77, %v970, %v976
    %v978 = vmul.f32 %v977, %v886
    %980 = vrot.lane.b32.xlu0 %v977, 64
    %v981 = vpop.permute.xlu0 %980
    %v983 = vmul.f32 %v977, %v981
    %985 = vrot.lane.b32.xlu0 %v983, 32
    %v986 = vpop.permute.xlu0 %985
    %v988 = vadd.f32 %v978, %v986
    %v989 = vtanh.pop %v988
    %991 = vrot.lane.b32.xlu0 %v989, 64
    %v992 = vpop.permute.xlu0 %991
    %v994 = vmul.f32 %v977, %v992
    %v995 = vrot.slane %v382, 6
    %v997 = vrot.slane %v484, 4
    %v999 = vrot.slane %v586, 2
    %v1001 = vrot.slane %v790, 6
    %v1003 = vrot.slane %v892, 4
    %v1006 = vrot.slane %v994, 2
    %vm1008 = vcmask 1041408
    %v1009 = vsel %vm1008, %v280, %v995
    %v1010 = vsel %vm95, %v1009, %v997
    %vm1011 = vcmask 1045504
    %v1012 = vsel %vm1011, %v1010, %v999
    %v1013 = vsel %vm1008, %v688, %v1001
    %v1014 = vsel %vm95, %v1013, %v1003
    %v1015 = vsel %vm1011, %v1014, %v1006
    %v1016 = vld [vmem:[#allocation6] sm:$0xff]
    %v1017 = vld [vmem:[#allocation6 + $0x8] sm:$0xff]
    %v1018 = vld [vmem:[#allocation6 + $0x10] sm:$0xff]
    %v1019 = vld [vmem:[#allocation6 + $0x18] sm:$0xff]
    %v1020 = vld [vmem:[%s6] sm:$0x1]
    %v1022 = vlaneseq
    %v1023 = vshrl.u32 %v1022, 7
    %v1024 = vsub.s32 0, %v1023
    %v1025 = vrot.slane %v1020, %v1024
    %1029 = vrot.lane.b32.xlu0 %v1012, 32
    %v1030 = vpop.permute.xlu0 %1029
    %1031 = vrot.lane.b32.xlu0 %v1015, 32
    %v1032 = vpop.permute.xlu0 %1031
    %v1033 = vsel %vm181, %v1030, 0
    %v1035 = vsel %vm181, %v1032, 0
    %1037 = vmatprep.subr.mxu0 0.0
    %1038 = vmatpush1.msra.mxu0 %v1016
    %1039 = vmatprep.subr.mxu0 0.0
    %1040 = vmatpush1.msra.mxu0 %v1017
    %1041 = vmatprep.subr.mxu0 0.0
    %1042 = vmatpush1.msra.mxu0 %v1018
    %1043 = vmatprep.subr.mxu0 0.0
    %1044 = vmatpush1.msra.mxu0 %v1019
    %1045 = vmatprep.subr.mxu0 0.0
    %1046 = vmatpush1.msra.mxu0 0.0
    %1047 = vmatprep.subr.mxu0 0.0
    %1048 = vmatpush1.msra.mxu0 0.0
    %1049 = vmatprep.subr.mxu0 0.0
    %1050 = vmatpush1.msra.mxu0 0.0
    %1051 = vmatprep.subr.mxu0 0.0
    %1052 = vmatpush1.msra.mxu0 0.0
    %1053 = vmatprep.subr.mxu0 0.0
    %1054 = vmatpush1.msra.mxu0 0.0
    %1055 = vmatprep.subr.mxu0 0.0
    %1056 = vmatpush1.msra.mxu0 0.0
    %1057 = vmatprep.subr.mxu0 0.0
    %1058 = vmatpush1.msra.mxu0 0.0
    %1059 = vmatprep.subr.mxu0 0.0
    %1060 = vmatpush1.msra.mxu0 0.0
    %1061 = vmatprep.subr.mxu0 0.0
    %1062 = vmatpush1.msra.mxu0 0.0
    %1063 = vmatprep.subr.mxu0 0.0
    %1064 = vmatpush1.msra.mxu0 0.0
    %1065 = vmatprep.subr.mxu0 0.0
    %1066 = vmatpush1.msra.mxu0 0.0
    %1067 = vmatprep.subr.mxu0 0.0
    %1068 = vmatpush1.msra.mxu0 0.0
    %1069 = vmatprep.subr.mxu0 0.0
    %1070 = vmatpush1.msra.mxu0 0.0
    %1071 = vmatprep.subr.mxu0 0.0
    %1072 = vmatpush1.msra.mxu0 0.0
    %1073 = vmatprep.subr.mxu0 0.0
    %1074 = vmatpush1.msra.mxu0 0.0
    %1075 = vmatprep.subr.mxu0 0.0
    %1076 = vmatpush1.msra.mxu0 0.0
    %1077 = vmatprep.subr.mxu0 0.0
    %1078 = vmatpush1.msra.mxu0 0.0
    %1079 = vmatprep.subr.mxu0 0.0
    %1080 = vmatpush1.msra.mxu0 0.0
    %1081 = vmatprep.subr.mxu0 0.0
    %1082 = vmatpush1.msra.mxu0 0.0
    %1083 = vmatprep.subr.mxu0 0.0
    %1084 = vmatpush1.msra.mxu0 0.0
    %1085 = vmatprep.subr.mxu0 0.0
    %1086 = vmatpush1.msra.mxu0 0.0
    %1087 = vmatprep.subr.mxu0 0.0
    %1088 = vmatpush1.msra.mxu0 0.0
    %1089 = vmatprep.subr.mxu0 0.0
    %1090 = vmatpush1.msra.mxu0 0.0
    %1091 = vmatprep.subr.mxu0 0.0
    %1092 = vmatpush1.msra.mxu0 0.0
    %1093 = vmatprep.subr.mxu0 0.0
    %1094 = vmatpush1.msra.mxu0 0.0
    %1095 = vmatprep.subr.mxu0 0.0
    %1096 = vmatpush1.msra.mxu0 0.0
    %1097 = vmatprep.subr.mxu0 0.0
    %1098 = vmatpush1.msra.mxu0 0.0
    %1099 = vmatprep.subr.mxu0 0.0
    %1100 = vmatpush1.msra.mxu0 0.0
    %1101 = vmatprep.mubr.f32.mxu0 0.0
    %1102 = vmatmul.mubr.f32.gmra.mrb[0].mxu0 %v1033
    %v1103 = vpop.f32.mrb[0].mxu0
    %v1104 = vadd.f32 %v1025, %v1103
    %v1105 = vpop.f32.mrb[0].mxu0
    %1106 = vmatprep.mubr.f32.mxu0 0.0
    %1107 = vmatmul.mubr.f32.gmra.mrb[0].mxu0 %v1035
    %v1108 = vpop.f32.mrb[0].mxu0
    %v1109 = vadd.f32 %v1025, %v1108
    %v1110 = vpop.f32.mrb[0].mxu0
    %1111 = vdwg.mxu0
    %1112 = vst [vmem:[#allocation2] sm:$0xff] %v1104
    %1113 = vst [vmem:[#allocation2 + $0x8] sm:$0xff] %v1109
    %v1114 = vld [vmem:[#allocation8] sm:$0xff]
    %v1115 = vld [vmem:[#allocation8 + $0x8] sm:$0xff]
    %v1116 = vld [vmem:[#allocation8 + $0x10] sm:$0xff]
    %v1117 = vld [vmem:[#allocation8 + $0x18] sm:$0xff]
    %v1118 = vld [vmem:[#allocation2] sm:$0x3]
    %1119 = vmatprep.subr.mxu0 0.0
    %1120 = vmatpush1.msra.mxu0 %v1114
    %1121 = vmatprep.subr.mxu0 0.0
    %1122 = vmatpush1.msra.mxu0 %v1115
    %1123 = vmatprep.subr.mxu0 0.0
    %1124 = vmatpush1.msra.mxu0 %v1116
    %1125 = vmatprep.subr.mxu0 0.0
    %1126 = vmatpush1.msra.mxu0 %v1117
    %1127 = vmatprep.subr.mxu0 0.0
    %1128 = vmatpush1.msra.mxu0 0.0
    %1129 = vmatprep.subr.mxu0 0.0
    %1130 = vmatpush1.msra.mxu0 0.0
    %1131 = vmatprep.subr.mxu0 0.0
    %1132 = vmatpush1.msra.mxu0 0.0
    %1133 = vmatprep.subr.mxu0 0.0
    %1134 = vmatpush1.msra.mxu0 0.0
    %1135 = vmatprep.subr.mxu0 0.0
    %1136 = vmatpush1.msra.mxu0 0.0
    %1137 = vmatprep.subr.mxu0 0.0
    %1138 = vmatpush1.msra.mxu0 0.0
    %1139 = vmatprep.subr.mxu0 0.0
    %1140 = vmatpush1.msra.mxu0 0.0
    %1141 = vmatprep.subr.mxu0 0.0
    %1142 = vmatpush1.msra.mxu0 0.0
    %1143 = vmatprep.subr.mxu0 0.0
    %1144 = vmatpush1.msra.mxu0 0.0
    %1145 = vmatprep.subr.mxu0 0.0
    %1146 = vmatpush1.msra.mxu0 0.0
    %1147 = vmatprep.subr.mxu0 0.0
    %1148 = vmatpush1.msra.mxu0 0.0
    %1149 = vmatprep.subr.mxu0 0.0
    %1150 = vmatpush1.msra.mxu0 0.0
    %1151 = vmatprep.subr.mxu0 0.0
    %1152 = vmatpush1.msra.mxu0 0.0
    %1153 = vmatprep.subr.mxu0 0.0
    %1154 = vmatpush1.msra.mxu0 0.0
    %1155 = vmatprep.subr.mxu0 0.0
    %1156 = vmatpush1.msra.mxu0 0.0
    %1157 = vmatprep.subr.mxu0 0.0
    %1158 = vmatpush1.msra.mxu0 0.0
    %1159 = vmatprep.subr.mxu0 0.0
    %1160 = vmatpush1.msra.mxu0 0.0
    %1161 = vmatprep.subr.mxu0 0.0
    %1162 = vmatpush1.msra.mxu0 0.0
    %1163 = vmatprep.subr.mxu0 0.0
    %1164 = vmatpush1.msra.mxu0 0.0
    %1165 = vmatprep.subr.mxu0 0.0
    %1166 = vmatpush1.msra.mxu0 0.0
    %1167 = vmatprep.subr.mxu0 0.0
    %1168 = vmatpush1.msra.mxu0 0.0
    %1169 = vmatprep.subr.mxu0 0.0
    %1170 = vmatpush1.msra.mxu0 0.0
    %1171 = vmatprep.subr.mxu0 0.0
    %1172 = vmatpush1.msra.mxu0 0.0
    %1173 = vmatprep.subr.mxu0 0.0
    %1174 = vmatpush1.msra.mxu0 0.0
    %1175 = vmatprep.subr.mxu0 0.0
    %1176 = vmatpush1.msra.mxu0 0.0
    %1177 = vmatprep.subr.mxu0 0.0
    %1178 = vmatpush1.msra.mxu0 0.0
    %1179 = vmatprep.subr.mxu0 0.0
    %1180 = vmatpush1.msra.mxu0 0.0
    %1181 = vmatprep.subr.mxu0 0.0
    %1182 = vmatpush1.msra.mxu0 0.0
    %1183 = vmatprep.mubr.f32.mxu0 0.0
    %1184 = vmatmul.mubr.f32.gmra.mrb[0].mxu0 %v183
    %v1185 = vpop.f32.mrb[0].mxu0
    %v1186 = vadd.f32 0.0, %v1185
    %v1187 = vpop.f32.mrb[0].mxu0
    %1188 = vdwg.mxu0
    %v1189 = vadd.f32 %v1118, %v1186
    %v1190 = vtanh.pop %v1189
    %v1191 = vxor.u32 %v1189, 2147483648
    %v1192 = vmul.f32 %v1191, 1.442695
    %v1193 = vpow.pop %v1192
    %v1194 = vadd.f32 %v1193, 1.0
    %v1195 = vrcp.pop %v1194
    %v1196 = vmul.f32 1.0, %v1195
    %v1197 = vsel %vm77, %v1190, %v1196
    %v1198 = vmul.f32 %v1197, 0.0
    %1200 = vrot.lane.b32.xlu0 %v1197, 64
    %v1201 = vpop.permute.xlu0 %1200
    %v1203 = vmul.f32 %v1197, %v1201
    %1205 = vrot.lane.b32.xlu0 %v1203, 32
    %v1206 = vpop.permute.xlu0 %1205
    %v1208 = vadd.f32 %v1198, %v1206
    %v1209 = vtanh.pop %v1208
    %1211 = vrot.lane.b32.xlu0 %v1209, 64
    %v1212 = vpop.permute.xlu0 %1211
    %v1214 = vmul.f32 %v1197, %v1212
    %v1215 = vld [vmem:[#allocation2 + $0x2] sm:$0x3]
    %1217 = vrot.lane.b32.xlu0 %v1214, 32
    %v1218 = vpop.permute.xlu0 %1217
    %v1219 = vsel %vm181, %v1218, 0
    %1221 = vmatprep.subr.mxu0 0.0
    %1222 = vmatpush1.msra.mxu0 %v1114
    %1223 = vmatprep.subr.mxu0 0.0
    %1224 = vmatpush1.msra.mxu0 %v1115
    %1225 = vmatprep.subr.mxu0 0.0
    %1226 = vmatpush1.msra.mxu0 %v1116
    %1227 = vmatprep.subr.mxu0 0.0
    %1228 = vmatpush1.msra.mxu0 %v1117
    %1229 = vmatprep.subr.mxu0 0.0
    %1230 = vmatpush1.msra.mxu0 0.0
    %1231 = vmatprep.subr.mxu0 0.0
    %1232 = vmatpush1.msra.mxu0 0.0
    %1233 = vmatprep.subr.mxu0 0.0
    %1234 = vmatpush1.msra.mxu0 0.0
    %1235 = vmatprep.subr.mxu0 0.0
    %1236 = vmatpush1.msra.mxu0 0.0
    %1237 = vmatprep.subr.mxu0 0.0
    %1238 = vmatpush1.msra.mxu0 0.0
    %1239 = vmatprep.subr.mxu0 0.0
    %1240 = vmatpush1.msra.mxu0 0.0
    %1241 = vmatprep.subr.mxu0 0.0
    %1242 = vmatpush1.msra.mxu0 0.0
    %1243 = vmatprep.subr.mxu0 0.0
    %1244 = vmatpush1.msra.mxu0 0.0
    %1245 = vmatprep.subr.mxu0 0.0
    %1246 = vmatpush1.msra.mxu0 0.0
    %1247 = vmatprep.subr.mxu0 0.0
    %1248 = vmatpush1.msra.mxu0 0.0
    %1249 = vmatprep.subr.mxu0 0.0
    %1250 = vmatpush1.msra.mxu0 0.0
    %1251 = vmatprep.subr.mxu0 0.0
    %1252 = vmatpush1.msra.mxu0 0.0
    %1253 = vmatprep.subr.mxu0 0.0
    %1254 = vmatpush1.msra.mxu0 0.0
    %1255 = vmatprep.subr.mxu0 0.0
    %1256 = vmatpush1.msra.mxu0 0.0
    %1257 = vmatprep.subr.mxu0 0.0
    %1258 = vmatpush1.msra.mxu0 0.0
    %1259 = vmatprep.subr.mxu0 0.0
    %1260 = vmatpush1.msra.mxu0 0.0
    %1261 = vmatprep.subr.mxu0 0.0
    %1262 = vmatpush1.msra.mxu0 0.0
    %1263 = vmatprep.subr.mxu0 0.0
    %1264 = vmatpush1.msra.mxu0 0.0
    %1265 = vmatprep.subr.mxu0 0.0
    %1266 = vmatpush1.msra.mxu0 0.0
    %1267 = vmatprep.subr.mxu0 0.0
    %1268 = vmatpush1.msra.mxu0 0.0
    %1269 = vmatprep.subr.mxu0 0.0
    %1270 = vmatpush1.msra.mxu0 0.0
    %1271 = vmatprep.subr.mxu0 0.0
    %1272 = vmatpush1.msra.mxu0 0.0
    %1273 = vmatprep.subr.mxu0 0.0
    %1274 = vmatpush1.msra.mxu0 0.0
    %1275 = vmatprep.subr.mxu0 0.0
    %1276 = vmatpush1.msra.mxu0 0.0
    %1277 = vmatprep.subr.mxu0 0.0
    %1278 = vmatpush1.msra.mxu0 0.0
    %1279 = vmatprep.subr.mxu0 0.0
    %1280 = vmatpush1.msra.mxu0 0.0
    %1281 = vmatprep.subr.mxu0 0.0
    %1282 = vmatpush1.msra.mxu0 0.0
    %1283 = vmatprep.subr.mxu0 0.0
    %1284 = vmatpush1.msra.mxu0 0.0
    %1285 = vmatprep.mubr.f32.mxu0 0.0
    %1286 = vmatmul.mubr.f32.gmra.mrb[0].mxu0 %v1219
    %v1287 = vpop.f32.mrb[0].mxu0
    %v1288 = vadd.f32 0.0, %v1287
    %v1289 = vpop.f32.mrb[0].mxu0
    %1290 = vdwg.mxu0
    %v1291 = vadd.f32 %v1215, %v1288
    %v1292 = vtanh.pop %v1291
    %v1293 = vxor.u32 %v1291, 2147483648
    %v1294 = vmul.f32 %v1293, 1.442695
    %v1295 = vpow.pop %v1294
    %v1296 = vadd.f32 %v1295, 1.0
    %v1297 = vrcp.pop %v1296
    %v1298 = vmul.f32 1.0, %v1297
    %v1299 = vsel %vm77, %v1292, %v1298
    %v1300 = vmul.f32 %v1299, %v1208
    %1302 = vrot.lane.b32.xlu0 %v1299, 64
    %v1303 = vpop.permute.xlu0 %1302
    %v1305 = vmul.f32 %v1299, %v1303
    %1307 = vrot.lane.b32.xlu0 %v1305, 32
    %v1308 = vpop.permute.xlu0 %1307
    %v1310 = vadd.f32 %v1300, %v1308
    %v1311 = vtanh.pop %v1310
    %1313 = vrot.lane.b32.xlu0 %v1311, 64
    %v1314 = vpop.permute.xlu0 %1313
    %v1316 = vmul.f32 %v1299, %v1314
    %v1317 = vld [vmem:[#allocation2 + $0x4] sm:$0x3]
    %1319 = vrot.lane.b32.xlu0 %v1316, 32
    %v1320 = vpop.permute.xlu0 %1319
    %v1321 = vsel %vm181, %v1320, 0
    %1323 = vmatprep.subr.mxu0 0.0
    %1324 = vmatpush1.msra.mxu0 %v1114
    %1325 = vmatprep.subr.mxu0 0.0
    %1326 = vmatpush1.msra.mxu0 %v1115
    %1327 = vmatprep.subr.mxu0 0.0
    %1328 = vmatpush1.msra.mxu0 %v1116
    %1329 = vmatprep.subr.mxu0 0.0
    %1330 = vmatpush1.msra.mxu0 %v1117
    %1331 = vmatprep.subr.mxu0 0.0
    %1332 = vmatpush1.msra.mxu0 0.0
    %1333 = vmatprep.subr.mxu0 0.0
    %1334 = vmatpush1.msra.mxu0 0.0
    %1335 = vmatprep.subr.mxu0 0.0
    %1336 = vmatpush1.msra.mxu0 0.0
    %1337 = vmatprep.subr.mxu0 0.0
    %1338 = vmatpush1.msra.mxu0 0.0
    %1339 = vmatprep.subr.mxu0 0.0
    %1340 = vmatpush1.msra.mxu0 0.0
    %1341 = vmatprep.subr.mxu0 0.0
    %1342 = vmatpush1.msra.mxu0 0.0
    %1343 = vmatprep.subr.mxu0 0.0
    %1344 = vmatpush1.msra.mxu0 0.0
    %1345 = vmatprep.subr.mxu0 0.0
    %1346 = vmatpush1.msra.mxu0 0.0
    %1347 = vmatprep.subr.mxu0 0.0
    %1348 = vmatpush1.msra.mxu0 0.0
    %1349 = vmatprep.subr.mxu0 0.0
    %1350 = vmatpush1.msra.mxu0 0.0
    %1351 = vmatprep.subr.mxu0 0.0
    %1352 = vmatpush1.msra.mxu0 0.0
    %1353 = vmatprep.subr.mxu0 0.0
    %1354 = vmatpush1.msra.mxu0 0.0
    %1355 = vmatprep.subr.mxu0 0.0
    %1356 = vmatpush1.msra.mxu0 0.0
    %1357 = vmatprep.subr.mxu0 0.0
    %1358 = vmatpush1.msra.mxu0 0.0
    %1359 = vmatprep.subr.mxu0 0.0
    %1360 = vmatpush1.msra.mxu0 0.0
    %1361 = vmatprep.subr.mxu0 0.0
    %1362 = vmatpush1.msra.mxu0 0.0
    %1363 = vmatprep.subr.mxu0 0.0
    %1364 = vmatpush1.msra.mxu0 0.0
    %1365 = vmatprep.subr.mxu0 0.0
    %1366 = vmatpush1.msra.mxu0 0.0
    %1367 = vmatprep.subr.mxu0 0.0
    %1368 = vmatpush1.msra.mxu0 0.0
    %1369 = vmatprep.subr.mxu0 0.0
    %1370 = vmatpush1.msra.mxu0 0.0
    %1371 = vmatprep.subr.mxu0 0.0
    %1372 = vmatpush1.msra.mxu0 0.0
    %1373 = vmatprep.subr.mxu0 0.0
    %1374 = vmatpush1.msra.mxu0 0.0
    %1375 = vmatprep.subr.mxu0 0.0
    %1376 = vmatpush1.msra.mxu0 0.0
    %1377 = vmatprep.subr.mxu0 0.0
    %1378 = vmatpush1.msra.mxu0 0.0
    %1379 = vmatprep.subr.mxu0 0.0
    %1380 = vmatpush1.msra.mxu0 0.0
    %1381 = vmatprep.subr.mxu0 0.0
    %1382 = vmatpush1.msra.mxu0 0.0
    %1383 = vmatprep.subr.mxu0 0.0
    %1384 = vmatpush1.msra.mxu0 0.0
    %1385 = vmatprep.subr.mxu0 0.0
    %1386 = vmatpush1.msra.mxu0 0.0
    %1387 = vmatprep.mubr.f32.mxu0 0.0
    %1388 = vmatmul.mubr.f32.gmra.mrb[0].mxu0 %v1321
    %v1389 = vpop.f32.mrb[0].mxu0
    %v1390 = vadd.f32 0.0, %v1389
    %v1391 = vpop.f32.mrb[0].mxu0
    %1392 = vdwg.mxu0
    %v1393 = vadd.f32 %v1317, %v1390
    %v1394 = vtanh.pop %v1393
    %v1395 = vxor.u32 %v1393, 2147483648
    %v1396 = vmul.f32 %v1395, 1.442695
    %v1397 = vpow.pop %v1396
    %v1398 = vadd.f32 %v1397, 1.0
    %v1399 = vrcp.pop %v1398
    %v1400 = vmul.f32 1.0, %v1399
    %v1401 = vsel %vm77, %v1394, %v1400
    %v1402 = vmul.f32 %v1401, %v1310
    %1404 = vrot.lane.b32.xlu0 %v1401, 64
    %v1405 = vpop.permute.xlu0 %1404
    %v1407 = vmul.f32 %v1401, %v1405
    %1409 = vrot.lane.b32.xlu0 %v1407, 32
    %v1410 = vpop.permute.xlu0 %1409
    %v1412 = vadd.f32 %v1402, %v1410
    %v1413 = vtanh.pop %v1412
    %1415 = vrot.lane.b32.xlu0 %v1413, 64
    %v1416 = vpop.permute.xlu0 %1415
    %v1418 = vmul.f32 %v1401, %v1416
    %v1419 = vld [vmem:[#allocation2 + $0x6] sm:$0x3]
    %1421 = vrot.lane.b32.xlu0 %v1418, 32
    %v1422 = vpop.permute.xlu0 %1421
    %v1423 = vsel %vm181, %v1422, 0
    %1425 = vmatprep.subr.mxu0 0.0
    %1426 = vmatpush1.msra.mxu0 %v1114
    %1427 = vmatprep.subr.mxu0 0.0
    %1428 = vmatpush1.msra.mxu0 %v1115
    %1429 = vmatprep.subr.mxu0 0.0
    %1430 = vmatpush1.msra.mxu0 %v1116
    %1431 = vmatprep.subr.mxu0 0.0
    %1432 = vmatpush1.msra.mxu0 %v1117
    %1433 = vmatprep.subr.mxu0 0.0
    %1434 = vmatpush1.msra.mxu0 0.0
    %1435 = vmatprep.subr.mxu0 0.0
    %1436 = vmatpush1.msra.mxu0 0.0
    %1437 = vmatprep.subr.mxu0 0.0
    %1438 = vmatpush1.msra.mxu0 0.0
    %1439 = vmatprep.subr.mxu0 0.0
    %1440 = vmatpush1.msra.mxu0 0.0
    %1441 = vmatprep.subr.mxu0 0.0
    %1442 = vmatpush1.msra.mxu0 0.0
    %1443 = vmatprep.subr.mxu0 0.0
    %1444 = vmatpush1.msra.mxu0 0.0
    %1445 = vmatprep.subr.mxu0 0.0
    %1446 = vmatpush1.msra.mxu0 0.0
    %1447 = vmatprep.subr.mxu0 0.0
    %1448 = vmatpush1.msra.mxu0 0.0
    %1449 = vmatprep.subr.mxu0 0.0
    %1450 = vmatpush1.msra.mxu0 0.0
    %1451 = vmatprep.subr.mxu0 0.0
    %1452 = vmatpush1.msra.mxu0 0.0
    %1453 = vmatprep.subr.mxu0 0.0
    %1454 = vmatpush1.msra.mxu0 0.0
    %1455 = vmatprep.subr.mxu0 0.0
    %1456 = vmatpush1.msra.mxu0 0.0
    %1457 = vmatprep.subr.mxu0 0.0
    %1458 = vmatpush1.msra.mxu0 0.0
    %1459 = vmatprep.subr.mxu0 0.0
    %1460 = vmatpush1.msra.mxu0 0.0
    %1461 = vmatprep.subr.mxu0 0.0
    %1462 = vmatpush1.msra.mxu0 0.0
    %1463 = vmatprep.subr.mxu0 0.0
    %1464 = vmatpush1.msra.mxu0 0.0
    %1465 = vmatprep.subr.mxu0 0.0
    %1466 = vmatpush1.msra.mxu0 0.0
    %1467 = vmatprep.subr.mxu0 0.0
    %1468 = vmatpush1.msra.mxu0 0.0
    %1469 = vmatprep.subr.mxu0 0.0
    %1470 = vmatpush1.msra.mxu0 0.0
    %1471 = vmatprep.subr.mxu0 0.0
    %1472 = vmatpush1.msra.mxu0 0.0
    %1473 = vmatprep.subr.mxu0 0.0
    %1474 = vmatpush1.msra.mxu0 0.0
    %1475 = vmatprep.subr.mxu0 0.0
    %1476 = vmatpush1.msra.mxu0 0.0
    %1477 = vmatprep.subr.mxu0 0.0
    %1478 = vmatpush1.msra.mxu0 0.0
    %1479 = vmatprep.subr.mxu0 0.0
    %1480 = vmatpush1.msra.mxu0 0.0
    %1481 = vmatprep.subr.mxu0 0.0
    %1482 = vmatpush1.msra.mxu0 0.0
    %1483 = vmatprep.subr.mxu0 0.0
    %1484 = vmatpush1.msra.mxu0 0.0
    %1485 = vmatprep.subr.mxu0 0.0
    %1486 = vmatpush1.msra.mxu0 0.0
    %1487 = vmatprep.subr.mxu0 0.0
    %1488 = vmatpush1.msra.mxu0 0.0
    %1489 = vmatprep.mubr.f32.mxu0 0.0
    %1490 = vmatmul.mubr.f32.gmra.mrb[0].mxu0 %v1423
    %v1491 = vpop.f32.mrb[0].mxu0
    %v1492 = vadd.f32 0.0, %v1491
    %v1493 = vpop.f32.mrb[0].mxu0
    %1494 = vdwg.mxu0
    %v1495 = vadd.f32 %v1419, %v1492
    %v1496 = vtanh.pop %v1495
    %v1497 = vxor.u32 %v1495, 2147483648
    %v1498 = vmul.f32 %v1497, 1.442695
    %v1499 = vpow.pop %v1498
    %v1500 = vadd.f32 %v1499, 1.0
    %v1501 = vrcp.pop %v1500
    %v1502 = vmul.f32 1.0, %v1501
    %v1503 = vsel %vm77, %v1496, %v1502
    %v1504 = vmul.f32 %v1503, %v1412
    %1506 = vrot.lane.b32.xlu0 %v1503, 64
    %v1507 = vpop.permute.xlu0 %1506
    %v1509 = vmul.f32 %v1503, %v1507
    %1511 = vrot.lane.b32.xlu0 %v1509, 32
    %v1512 = vpop.permute.xlu0 %1511
    %v1514 = vadd.f32 %v1504, %v1512
    %v1515 = vtanh.pop %v1514
    %1517 = vrot.lane.b32.xlu0 %v1515, 64
    %v1518 = vpop.permute.xlu0 %1517
    %v1520 = vmul.f32 %v1503, %v1518
    %v1521 = vld [vmem:[#allocation2 + $0x8] sm:$0x3]
    %1523 = vrot.lane.b32.xlu0 %v1520, 32
    %v1524 = vpop.permute.xlu0 %1523
    %v1525 = vsel %vm181, %v1524, 0
    %1527 = vmatprep.subr.mxu0 0.0
    %1528 = vmatpush1.msra.mxu0 %v1114
    %1529 = vmatprep.subr.mxu0 0.0
    %1530 = vmatpush1.msra.mxu0 %v1115
    %1531 = vmatprep.subr.mxu0 0.0
    %1532 = vmatpush1.msra.mxu0 %v1116
    %1533 = vmatprep.subr.mxu0 0.0
    %1534 = vmatpush1.msra.mxu0 %v1117
    %1535 = vmatprep.subr.mxu0 0.0
    %1536 = vmatpush1.msra.mxu0 0.0
    %1537 = vmatprep.subr.mxu0 0.0
    %1538 = vmatpush1.msra.mxu0 0.0
    %1539 = vmatprep.subr.mxu0 0.0
    %1540 = vmatpush1.msra.mxu0 0.0
    %1541 = vmatprep.subr.mxu0 0.0
    %1542 = vmatpush1.msra.mxu0 0.0
    %1543 = vmatprep.subr.mxu0 0.0
    %1544 = vmatpush1.msra.mxu0 0.0
    %1545 = vmatprep.subr.mxu0 0.0
    %1546 = vmatpush1.msra.mxu0 0.0
    %1547 = vmatprep.subr.mxu0 0.0
    %1548 = vmatpush1.msra.mxu0 0.0
    %1549 = vmatprep.subr.mxu0 0.0
    %1550 = vmatpush1.msra.mxu0 0.0
    %1551 = vmatprep.subr.mxu0 0.0
    %1552 = vmatpush1.msra.mxu0 0.0
    %1553 = vmatprep.subr.mxu0 0.0
    %1554 = vmatpush1.msra.mxu0 0.0
    %1555 = vmatprep.subr.mxu0 0.0
    %1556 = vmatpush1.msra.mxu0 0.0
    %1557 = vmatprep.subr.mxu0 0.0
    %1558 = vmatpush1.msra.mxu0 0.0
    %1559 = vmatprep.subr.mxu0 0.0
    %1560 = vmatpush1.msra.mxu0 0.0
    %1561 = vmatprep.subr.mxu0 0.0
    %1562 = vmatpush1.msra.mxu0 0.0
    %1563 = vmatprep.subr.mxu0 0.0
    %1564 = vmatpush1.msra.mxu0 0.0
    %1565 = vmatprep.subr.mxu0 0.0
    %1566 = vmatpush1.msra.mxu0 0.0
    %1567 = vmatprep.subr.mxu0 0.0
    %1568 = vmatpush1.msra.mxu0 0.0
    %1569 = vmatprep.subr.mxu0 0.0
    %1570 = vmatpush1.msra.mxu0 0.0
    %1571 = vmatprep.subr.mxu0 0.0
    %1572 = vmatpush1.msra.mxu0 0.0
    %1573 = vmatprep.subr.mxu0 0.0
    %1574 = vmatpush1.msra.mxu0 0.0
    %1575 = vmatprep.subr.mxu0 0.0
    %1576 = vmatpush1.msra.mxu0 0.0
    %1577 = vmatprep.subr.mxu0 0.0
    %1578 = vmatpush1.msra.mxu0 0.0
    %1579 = vmatprep.subr.mxu0 0.0
    %1580 = vmatpush1.msra.mxu0 0.0
    %1581 = vmatprep.subr.mxu0 0.0
    %1582 = vmatpush1.msra.mxu0 0.0
    %1583 = vmatprep.subr.mxu0 0.0
    %1584 = vmatpush1.msra.mxu0 0.0
    %1585 = vmatprep.subr.mxu0 0.0
    %1586 = vmatpush1.msra.mxu0 0.0
    %1587 = vmatprep.subr.mxu0 0.0
    %1588 = vmatpush1.msra.mxu0 0.0
    %1589 = vmatprep.subr.mxu0 0.0
    %1590 = vmatpush1.msra.mxu0 0.0
    %1591 = vmatprep.mubr.f32.mxu0 0.0
    %1592 = vmatmul.mubr.f32.gmra.mrb[0].mxu0 %v1525
    %v1593 = vpop.f32.mrb[0].mxu0
    %v1594 = vadd.f32 0.0, %v1593
    %v1595 = vpop.f32.mrb[0].mxu0
    %1596 = vdwg.mxu0
    %v1597 = vadd.f32 %v1521, %v1594
    %v1598 = vtanh.pop %v1597
    %v1599 = vxor.u32 %v1597, 2147483648
    %v1600 = vmul.f32 %v1599, 1.442695
    %v1601 = vpow.pop %v1600
    %v1602 = vadd.f32 %v1601, 1.0
    %v1603 = vrcp.pop %v1602
    %v1604 = vmul.f32 1.0, %v1603
    %v1605 = vsel %vm77, %v1598, %v1604
    %v1606 = vmul.f32 %v1605, %v1514
    %1608 = vrot.lane.b32.xlu0 %v1605, 64
    %v1609 = vpop.permute.xlu0 %1608
    %v1611 = vmul.f32 %v1605, %v1609
    %1613 = vrot.lane.b32.xlu0 %v1611, 32
    %v1614 = vpop.permute.xlu0 %1613
    %v1616 = vadd.f32 %v1606, %v1614
    %v1617 = vtanh.pop %v1616
    %1619 = vrot.lane.b32.xlu0 %v1617, 64
    %v1620 = vpop.permute.xlu0 %1619
    %v1622 = vmul.f32 %v1605, %v1620
    %v1623 = vld [vmem:[#allocation2 + $0xa] sm:$0x3]
    %1625 = vrot.lane.b32.xlu0 %v1622, 32
    %v1626 = vpop.permute.xlu0 %1625
    %v1627 = vsel %vm181, %v1626, 0
    %1629 = vmatprep.subr.mxu0 0.0
    %1630 = vmatpush1.msra.mxu0 %v1114
    %1631 = vmatprep.subr.mxu0 0.0
    %1632 = vmatpush1.msra.mxu0 %v1115
    %1633 = vmatprep.subr.mxu0 0.0
    %1634 = vmatpush1.msra.mxu0 %v1116
    %1635 = vmatprep.subr.mxu0 0.0
    %1636 = vmatpush1.msra.mxu0 %v1117
    %1637 = vmatprep.subr.mxu0 0.0
    %1638 = vmatpush1.msra.mxu0 0.0
    %1639 = vmatprep.subr.mxu0 0.0
    %1640 = vmatpush1.msra.mxu0 0.0
    %1641 = vmatprep.subr.mxu0 0.0
    %1642 = vmatpush1.msra.mxu0 0.0
    %1643 = vmatprep.subr.mxu0 0.0
    %1644 = vmatpush1.msra.mxu0 0.0
    %1645 = vmatprep.subr.mxu0 0.0
    %1646 = vmatpush1.msra.mxu0 0.0
    %1647 = vmatprep.subr.mxu0 0.0
    %1648 = vmatpush1.msra.mxu0 0.0
    %1649 = vmatprep.subr.mxu0 0.0
    %1650 = vmatpush1.msra.mxu0 0.0
    %1651 = vmatprep.subr.mxu0 0.0
    %1652 = vmatpush1.msra.mxu0 0.0
    %1653 = vmatprep.subr.mxu0 0.0
    %1654 = vmatpush1.msra.mxu0 0.0
    %1655 = vmatprep.subr.mxu0 0.0
    %1656 = vmatpush1.msra.mxu0 0.0
    %1657 = vmatprep.subr.mxu0 0.0
    %1658 = vmatpush1.msra.mxu0 0.0
    %1659 = vmatprep.subr.mxu0 0.0
    %1660 = vmatpush1.msra.mxu0 0.0
    %1661 = vmatprep.subr.mxu0 0.0
    %1662 = vmatpush1.msra.mxu0 0.0
    %1663 = vmatprep.subr.mxu0 0.0
    %1664 = vmatpush1.msra.mxu0 0.0
    %1665 = vmatprep.subr.mxu0 0.0
    %1666 = vmatpush1.msra.mxu0 0.0
    %1667 = vmatprep.subr.mxu0 0.0
    %1668 = vmatpush1.msra.mxu0 0.0
    %1669 = vmatprep.subr.mxu0 0.0
    %1670 = vmatpush1.msra.mxu0 0.0
    %1671 = vmatprep.subr.mxu0 0.0
    %1672 = vmatpush1.msra.mxu0 0.0
    %1673 = vmatprep.subr.mxu0 0.0
    %1674 = vmatpush1.msra.mxu0 0.0
    %1675 = vmatprep.subr.mxu0 0.0
    %1676 = vmatpush1.msra.mxu0 0.0
    %1677 = vmatprep.subr.mxu0 0.0
    %1678 = vmatpush1.msra.mxu0 0.0
    %1679 = vmatprep.subr.mxu0 0.0
    %1680 = vmatpush1.msra.mxu0 0.0
    %1681 = vmatprep.subr.mxu0 0.0
    %1682 = vmatpush1.msra.mxu0 0.0
    %1683 = vmatprep.subr.mxu0 0.0
    %1684 = vmatpush1.msra.mxu0 0.0
    %1685 = vmatprep.subr.mxu0 0.0
    %1686 = vmatpush1.msra.mxu0 0.0
    %1687 = vmatprep.subr.mxu0 0.0
    %1688 = vmatpush1.msra.mxu0 0.0
    %1689 = vmatprep.subr.mxu0 0.0
    %1690 = vmatpush1.msra.mxu0 0.0
    %1691 = vmatprep.subr.mxu0 0.0
    %1692 = vmatpush1.msra.mxu0 0.0
    %1693 = vmatprep.mubr.f32.mxu0 0.0
    %1694 = vmatmul.mubr.f32.gmra.mrb[0].mxu0 %v1627
    %v1695 = vpop.f32.mrb[0].mxu0
    %v1696 = vadd.f32 0.0, %v1695
    %v1697 = vpop.f32.mrb[0].mxu0
    %1698 = vdwg.mxu0
    %v1699 = vadd.f32 %v1623, %v1696
    %v1700 = vtanh.pop %v1699
    %v1701 = vxor.u32 %v1699, 2147483648
    %v1702 = vmul.f32 %v1701, 1.442695
    %v1703 = vpow.pop %v1702
    %v1704 = vadd.f32 %v1703, 1.0
    %v1705 = vrcp.pop %v1704
    %v1706 = vmul.f32 1.0, %v1705
    %v1707 = vsel %vm77, %v1700, %v1706
    %v1708 = vmul.f32 %v1707, %v1616
    %1710 = vrot.lane.b32.xlu0 %v1707, 64
    %v1711 = vpop.permute.xlu0 %1710
    %v1713 = vmul.f32 %v1707, %v1711
    %1715 = vrot.lane.b32.xlu0 %v1713, 32
    %v1716 = vpop.permute.xlu0 %1715
    %v1718 = vadd.f32 %v1708, %v1716
    %v1719 = vtanh.pop %v1718
    %1721 = vrot.lane.b32.xlu0 %v1719, 64
    %v1722 = vpop.permute.xlu0 %1721
    %v1724 = vmul.f32 %v1707, %v1722
    %v1725 = vld [vmem:[#allocation2 + $0xc] sm:$0x3]
    %1727 = vrot.lane.b32.xlu0 %v1724, 32
    %v1728 = vpop.permute.xlu0 %1727
    %v1729 = vsel %vm181, %v1728, 0
    %1731 = vmatprep.subr.mxu0 0.0
    %1732 = vmatpush1.msra.mxu0 %v1114
    %1733 = vmatprep.subr.mxu0 0.0
    %1734 = vmatpush1.msra.mxu0 %v1115
    %1735 = vmatprep.subr.mxu0 0.0
    %1736 = vmatpush1.msra.mxu0 %v1116
    %1737 = vmatprep.subr.mxu0 0.0
    %1738 = vmatpush1.msra.mxu0 %v1117
    %1739 = vmatprep.subr.mxu0 0.0
    %1740 = vmatpush1.msra.mxu0 0.0
    %1741 = vmatprep.subr.mxu0 0.0
    %1742 = vmatpush1.msra.mxu0 0.0
    %1743 = vmatprep.subr.mxu0 0.0
    %1744 = vmatpush1.msra.mxu0 0.0
    %1745 = vmatprep.subr.mxu0 0.0
    %1746 = vmatpush1.msra.mxu0 0.0
    %1747 = vmatprep.subr.mxu0 0.0
    %1748 = vmatpush1.msra.mxu0 0.0
    %1749 = vmatprep.subr.mxu0 0.0
    %1750 = vmatpush1.msra.mxu0 0.0
    %1751 = vmatprep.subr.mxu0 0.0
    %1752 = vmatpush1.msra.mxu0 0.0
    %1753 = vmatprep.subr.mxu0 0.0
    %1754 = vmatpush1.msra.mxu0 0.0
    %1755 = vmatprep.subr.mxu0 0.0
    %1756 = vmatpush1.msra.mxu0 0.0
    %1757 = vmatprep.subr.mxu0 0.0
    %1758 = vmatpush1.msra.mxu0 0.0
    %1759 = vmatprep.subr.mxu0 0.0
    %1760 = vmatpush1.msra.mxu0 0.0
    %1761 = vmatprep.subr.mxu0 0.0
    %1762 = vmatpush1.msra.mxu0 0.0
    %1763 = vmatprep.subr.mxu0 0.0
    %1764 = vmatpush1.msra.mxu0 0.0
    %1765 = vmatprep.subr.mxu0 0.0
    %1766 = vmatpush1.msra.mxu0 0.0
    %1767 = vmatprep.subr.mxu0 0.0
    %1768 = vmatpush1.msra.mxu0 0.0
    %1769 = vmatprep.subr.mxu0 0.0
    %1770 = vmatpush1.msra.mxu0 0.0
    %1771 = vmatprep.subr.mxu0 0.0
    %1772 = vmatpush1.msra.mxu0 0.0
    %1773 = vmatprep.subr.mxu0 0.0
    %1774 = vmatpush1.msra.mxu0 0.0
    %1775 = vmatprep.subr.mxu0 0.0
    %1776 = vmatpush1.msra.mxu0 0.0
    %1777 = vmatprep.subr.mxu0 0.0
    %1778 = vmatpush1.msra.mxu0 0.0
    %1779 = vmatprep.subr.mxu0 0.0
    %1780 = vmatpush1.msra.mxu0 0.0
    %1781 = vmatprep.subr.mxu0 0.0
    %1782 = vmatpush1.msra.mxu0 0.0
    %1783 = vmatprep.subr.mxu0 0.0
    %1784 = vmatpush1.msra.mxu0 0.0
    %1785 = vmatprep.subr.mxu0 0.0
    %1786 = vmatpush1.msra.mxu0 0.0
    %1787 = vmatprep.subr.mxu0 0.0
    %1788 = vmatpush1.msra.mxu0 0.0
    %1789 = vmatprep.subr.mxu0 0.0
    %1790 = vmatpush1.msra.mxu0 0.0
    %1791 = vmatprep.subr.mxu0 0.0
    %1792 = vmatpush1.msra.mxu0 0.0
    %1793 = vmatprep.subr.mxu0 0.0
    %1794 = vmatpush1.msra.mxu0 0.0
    %1795 = vmatprep.mubr.f32.mxu0 0.0
    %1796 = vmatmul.mubr.f32.gmra.mrb[0].mxu0 %v1729
    %v1797 = vpop.f32.mrb[0].mxu0
    %v1798 = vadd.f32 0.0, %v1797
    %v1799 = vpop.f32.mrb[0].mxu0
    %1800 = vdwg.mxu0
    %v1801 = vadd.f32 %v1725, %v1798
    %v1802 = vtanh.pop %v1801
    %v1803 = vxor.u32 %v1801, 2147483648
    %v1804 = vmul.f32 %v1803, 1.442695
    %v1805 = vpow.pop %v1804
    %v1806 = vadd.f32 %v1805, 1.0
    %v1807 = vrcp.pop %v1806
    %v1808 = vmul.f32 1.0, %v1807
    %v1809 = vsel %vm77, %v1802, %v1808
    %v1810 = vmul.f32 %v1809, %v1718
    %1812 = vrot.lane.b32.xlu0 %v1809, 64
    %v1813 = vpop.permute.xlu0 %1812
    %v1815 = vmul.f32 %v1809, %v1813
    %1817 = vrot.lane.b32.xlu0 %v1815, 32
    %v1818 = vpop.permute.xlu0 %1817
    %v1820 = vadd.f32 %v1810, %v1818
    %v1821 = vtanh.pop %v1820
    %1823 = vrot.lane.b32.xlu0 %v1821, 64
    %v1824 = vpop.permute.xlu0 %1823
    %v1826 = vmul.f32 %v1809, %v1824
    %v1827 = vld [vmem:[#allocation2 + $0xe] sm:$0x3]
    %1829 = vrot.lane.b32.xlu0 %v1826, 32
    %v1830 = vpop.permute.xlu0 %1829
    %v1831 = vsel %vm181, %v1830, 0
    %1833 = vmatprep.subr.mxu0 0.0
    %1834 = vmatpush1.msra.mxu0 %v1114
    %1835 = vmatprep.subr.mxu0 0.0
    %1836 = vmatpush1.msra.mxu0 %v1115
    %1837 = vmatprep.subr.mxu0 0.0
    %1838 = vmatpush1.msra.mxu0 %v1116
    %1839 = vmatprep.subr.mxu0 0.0
    %1840 = vmatpush1.msra.mxu0 %v1117
    %1841 = vmatprep.subr.mxu0 0.0
    %1842 = vmatpush1.msra.mxu0 0.0
    %1843 = vmatprep.subr.mxu0 0.0
    %1844 = vmatpush1.msra.mxu0 0.0
    %1845 = vmatprep.subr.mxu0 0.0
    %1846 = vmatpush1.msra.mxu0 0.0
    %1847 = vmatprep.subr.mxu0 0.0
    %1848 = vmatpush1.msra.mxu0 0.0
    %1849 = vmatprep.subr.mxu0 0.0
    %1850 = vmatpush1.msra.mxu0 0.0
    %1851 = vmatprep.subr.mxu0 0.0
    %1852 = vmatpush1.msra.mxu0 0.0
    %1853 = vmatprep.subr.mxu0 0.0
    %1854 = vmatpush1.msra.mxu0 0.0
    %1855 = vmatprep.subr.mxu0 0.0
    %1856 = vmatpush1.msra.mxu0 0.0
    %1857 = vmatprep.subr.mxu0 0.0
    %1858 = vmatpush1.msra.mxu0 0.0
    %1859 = vmatprep.subr.mxu0 0.0
    %1860 = vmatpush1.msra.mxu0 0.0
    %1861 = vmatprep.subr.mxu0 0.0
    %1862 = vmatpush1.msra.mxu0 0.0
    %1863 = vmatprep.subr.mxu0 0.0
    %1864 = vmatpush1.msra.mxu0 0.0
    %1865 = vmatprep.subr.mxu0 0.0
    %1866 = vmatpush1.msra.mxu0 0.0
    %1867 = vmatprep.subr.mxu0 0.0
    %1868 = vmatpush1.msra.mxu0 0.0
    %1869 = vmatprep.subr.mxu0 0.0
    %1870 = vmatpush1.msra.mxu0 0.0
    %1871 = vmatprep.subr.mxu0 0.0
    %1872 = vmatpush1.msra.mxu0 0.0
    %1873 = vmatprep.subr.mxu0 0.0
    %1874 = vmatpush1.msra.mxu0 0.0
    %1875 = vmatprep.subr.mxu0 0.0
    %1876 = vmatpush1.msra.mxu0 0.0
    %1877 = vmatprep.subr.mxu0 0.0
    %1878 = vmatpush1.msra.mxu0 0.0
    %1879 = vmatprep.subr.mxu0 0.0
    %1880 = vmatpush1.msra.mxu0 0.0
    %1881 = vmatprep.subr.mxu0 0.0
    %1882 = vmatpush1.msra.mxu0 0.0
    %1883 = vmatprep.subr.mxu0 0.0
    %1884 = vmatpush1.msra.mxu0 0.0
    %1885 = vmatprep.subr.mxu0 0.0
    %1886 = vmatpush1.msra.mxu0 0.0
    %1887 = vmatprep.subr.mxu0 0.0
    %1888 = vmatpush1.msra.mxu0 0.0
    %1889 = vmatprep.subr.mxu0 0.0
    %1890 = vmatpush1.msra.mxu0 0.0
    %1891 = vmatprep.subr.mxu0 0.0
    %1892 = vmatpush1.msra.mxu0 0.0
    %1893 = vmatprep.subr.mxu0 0.0
    %1894 = vmatpush1.msra.mxu0 0.0
    %1895 = vmatprep.subr.mxu0 0.0
    %1896 = vmatpush1.msra.mxu0 0.0
    %1897 = vmatprep.mubr.f32.mxu0 0.0
    %1898 = vmatmul.mubr.f32.gmra.mrb[0].mxu0 %v1831
    %v1899 = vpop.f32.mrb[0].mxu0
    %v1900 = vadd.f32 0.0, %v1899
    %v1901 = vpop.f32.mrb[0].mxu0
    %1902 = vdwg.mxu0
    %v1903 = vadd.f32 %v1827, %v1900
    %v1904 = vtanh.pop %v1903
    %v1905 = vxor.u32 %v1903, 2147483648
    %v1906 = vmul.f32 %v1905, 1.442695
    %v1907 = vpow.pop %v1906
    %v1908 = vadd.f32 %v1907, 1.0
    %v1909 = vrcp.pop %v1908
    %v1910 = vmul.f32 1.0, %v1909
    %v1911 = vsel %vm77, %v1904, %v1910
    %v1912 = vmul.f32 %v1911, %v1820
    %1914 = vrot.lane.b32.xlu0 %v1911, 64
    %v1915 = vpop.permute.xlu0 %1914
    %v1917 = vmul.f32 %v1911, %v1915
    %1919 = vrot.lane.b32.xlu0 %v1917, 32
    %v1920 = vpop.permute.xlu0 %1919
    %v1922 = vadd.f32 %v1912, %v1920
    %v1923 = vtanh.pop %v1922
    %1925 = vrot.lane.b32.xlu0 %v1923, 64
    %v1926 = vpop.permute.xlu0 %1925
    %v1928 = vmul.f32 %v1911, %v1926
    %v1929 = vld [vmem:[%s7] sm:$0x1]
    %v1931 = vlaneseq
    %v1932 = vshrl.u32 %v1931, 7
    %v1933 = vsub.s32 0, %v1932
    %v1934 = vrot.slane %v1929, %v1933
    %1935 = vrot.lane.b32.xlu0 %v1934, 96
    %v1936 = vpop.permute.xlu0 %1935
    %v1938 = vmul.f32 %v1928, %v1936
    %1940 = vrot.lane.b32.xlu0 %v1938, 32
    %v1941 = vpop.permute.xlu0 %1940
    %vm1943 = vcmask 254976
    %v1944 = vsel %vm1943, %v1941, 0.0
    %1945 = vadd.xlane.f32.xlu0 %v1944
    %v1946 = vpop.xlane.xlu0 %1945
    %v1947 = vld [vmem:[#allocation3] sm:$0x1]
    %v1949 = vlaneseq
    %v1950 = vshrl.u32 %v1949, 7
    %v1951 = vsub.s32 0, %v1950
    %v1952 = vrot.slane %v1947, %v1951
    %v1954 = vadd.f32 %v1946, %v1952
    %vm1955 = vcmask 1024
    %1956 = vst.msk [vmem:[%s9] sm:$0x3] %vm1955, %v1954
    // Predicated region
    $region50: #{lstm_forward.1} parent=1 // pred_check
      _
    $region51: #{lstm_forward.1} parent=1 // pred_check_branch
      %1958 = sbr.rel (0) target = $region53
    $region52: #{lstm_forward.1} parent=1 // pred_region
      _
    $region53: #{lstm_forward.1} parent=1 // pred_fallthru
      _
    // Predicated region
    $region54: #{lstm_forward.1} parent=1 // pred_check
      _
    $region55: #{lstm_forward.1} parent=1 // pred_check_branch
      %1960 = sbr.rel (0) target = $region57
    $region56: #{lstm_forward.1} parent=1 // pred_region
      _
    $region57: #{lstm_forward.1} parent=1 // pred_fallthru
      _
    %1961 = vsyncpa [#allocation5], 1
    %1962 = vsyncpa [#allocation7], 1

</llo_original>
